<compile_context>
chip_gen: v7x
topology: tpu7x:2x2x1
jax: 0.10.0
libtpu: 0.0.40
codegen_flags: <defaults>
</compile_context>

<pallas_src>
import jax
import jax.numpy as jnp
from jax.experimental import pallas as pl
from jax.experimental.pallas import tpu as pltpu

H1, H2 = 512, 256   # hidden widths of the discriminator MLP
LANE = 128          # lane-dense output width


def _round_up(x, m):
    return (x + m - 1) // m * m


def _batch_tile(B):
    """Batch tile: 256 for big batches (fills v6e/v7x 256x256 MXU), 128 for
    medium (>= 2 'parallel' tiles so v7x's second TC isn't idle), and a
    16-aligned tile for tiny batches (bf16 native (16,128) vreg tile)."""
    if B >= 512:
        return 256
    if B >= 128:
        return 128
    return _round_up(B, 16)


def _k_config(d_in):
    """Returns (bk, K_pad).  Single K tile (VMEM-resident W1) when the bf16
    W1 is small enough to sit in VMEM on every generation (even when the
    pipeline conservatively double-buffers it); streaming fallback otherwise."""
    K_min = _round_up(d_in, 128)
    if K_min * H1 * 2 <= 12 * 1024 * 1024:      # bf16 W1 <= 12 MiB -> resident
        return K_min, K_min
    bk = 2048                                    # streaming fallback, big DMAs
    return bk, _round_up(d_in, bk)


def _discriminator_kernel(x_ref, w1_ref, b1_ref, w2_ref, b2_ref,
                          w3_ref, b3_ref, o_ref, acc_ref):
    k = pl.program_id(1)

    @pl.when(k == 0)
    def _():
        acc_ref[...] = jnp.zeros_like(acc_ref)

    # Layer 1, K-tiled partial product: bf16 operands, f32 accumulate on MXU.
    acc_ref[...] += jnp.dot(x_ref[...], w1_ref[...],
                            preferred_element_type=jnp.float32)

    @pl.when(k == pl.num_programs(1) - 1)
    def _():
        # Layer 1 epilogue: bias + LeakyReLU(0.2), f32 (safe on v5e VPU).
        h1 = acc_ref[...] + b1_ref[...]
        h1 = jnp.where(h1 > 0, h1, 0.2 * h1)

        # Layer 2: (bm,512) @ (512,256) on MXU, bias + LeakyReLU(0.2) in f32.
        h2 = jnp.dot(h1.astype(jnp.bfloat16), w2_ref[...],
                     preferred_element_type=jnp.float32)
        h2 = h2 + b2_ref[...]
        h2 = jnp.where(h2 > 0, h2, 0.2 * h2)

        # Layer 3 (N=1): broadcast-mul + lane reduce on VPU/XLU instead of an
        # MXU matmul with only 1 active column.
        logits = jnp.sum(h2 * w3_ref[...], axis=-1, keepdims=True) + b3_ref[...]
        prob = jax.nn.sigmoid(logits)

        # Lane-dense store: replicate across the 128-lane output slab.
        o_ref[...] = jnp.broadcast_to(prob, o_ref.shape).astype(o_ref.dtype)


def prepare_params(params):
    """One-time weight prep (do NOT call per forward): bf16 cast + K padding
    for W1, bf16 cast for W2.  Biases / final row stay f32."""
    w1, b1, w2, b2, w3, b3 = params
    d_in = w1.shape[0]
    _, K_pad = _k_config(d_in)
    w1_p = w1.astype(jnp.bfloat16)
    if K_pad != d_in:
        w1_p = jnp.pad(w1_p, ((0, K_pad - d_in), (0, 0)))
    w2_b = w2.astype(jnp.bfloat16)
    return (w1_p, b1, w2_b, b2, w3, b3)


@jax.jit
def discriminator_forward(img, prep_params):
    """img: (B, C, H, W) float32.  prep_params from prepare_params().
    Returns (B, 1) float32."""
    w1_p, b1, w2_b, b2, w3, b3 = prep_params

    B = img.shape[0]
    d_in = 1
    for s in img.shape[1:]:
        d_in *= s

    bk, K_pad = _k_config(d_in)
    assert w1_p.shape == (K_pad, H1), (w1_p.shape, K_pad)

    bm = _batch_tile(B)
    B_pad = _round_up(B, bm)

    # Flatten + bf16 cast (matches torch img.view(B, -1) up to MXU precision).
    x = img.reshape(B, d_in).astype(jnp.bfloat16)
    if B_pad != B or K_pad != d_in:
        # jnp.pad fuses to a single pass; zero padding adds nothing to the acc.
        x = jnp.pad(x, ((0, B_pad - B), (0, K_pad - d_in)))

    grid = (B_pad // bm, K_pad // bk)

    # Conservative VMEM estimate (double-buffer everything the pipeline might)
    # so we can raise the scoped limit explicitly (v5e defaults to 16 MiB).
    vmem_est = (2 * bm * bk * 2            # x tile (bf16)
                + 2 * bk * H1 * 2          # W1 tile (bf16)
                + 2 * H1 * H2 * 2          # W2 (bf16)
                + 2 * (H1 + 2 * H2 + 1) * 4  # b1, b2, w3, b3 (f32)
                + 2 * bm * LANE * 4        # output slab (f32)
                + bm * H1 * 4)             # layer-1 accumulator scratch
    vmem_limit = min(max(vmem_est + (8 << 20), 32 << 20), 48 << 20)

    flops = 2 * B_pad * K_pad * H1 + 2 * B_pad * H1 * H2 + 2 * B_pad * H2
    bytes_accessed = (x.size * 2 + w1_p.size * 2 + w2_b.size * 2
                      + (b1.size + b2.size + w3.size + b3.size) * 4
                      + B_pad * LANE * 4)

    out = pl.pallas_call(
        _discriminator_kernel,
        out_shape=jax.ShapeDtypeStruct((B_pad, LANE), jnp.float32),
        grid_spec=pltpu.PrefetchScalarGridSpec(
            num_scalar_prefetch=0,
            grid=grid,
            in_specs=[
                pl.BlockSpec((bm, bk), lambda i, k: (i, k)),   # x tile (pipelined)
                pl.BlockSpec((bk, H1), lambda i, k: (k, 0)),   # W1 (resident when 1 K tile)
                pl.BlockSpec((1, H1), lambda i, k: (0, 0)),    # b1 (resident)
                pl.BlockSpec((H1, H2), lambda i, k: (0, 0)),   # W2 (resident)
                pl.BlockSpec((1, H2), lambda i, k: (0, 0)),    # b2 (resident)
                pl.BlockSpec((1, H2), lambda i, k: (0, 0)),    # w3 row (resident)
                pl.BlockSpec((1, 1), lambda i, k: (0, 0)),     # b3 (resident)
            ],
            out_specs=pl.BlockSpec((bm, LANE), lambda i, k: (i, 0)),
            scratch_shapes=[pltpu.VMEM((bm, H1), jnp.float32)],  # layer-1 acc
        ),
        compiler_params=pltpu.CompilerParams(
            dimension_semantics=("parallel", "arbitrary"),
            vmem_limit_bytes=int(vmem_limit)),
        cost_estimate=pl.CostEstimate(
            flops=int(flops),
            transcendentals=int(B_pad),
            bytes_accessed=int(bytes_accessed)),
    )(x, w1_p, b1, w2_b, b2, w3, b3)

    return out[:B, :1]


def init_params(key, d_in):
    """PyTorch-Linear-style init: U(-1/sqrt(fan_in), 1/sqrt(fan_in)).

    Weights stored as (in, out) so the kernel computes x @ W; the final layer's
    weight is stored as a (1, 256) row for the VPU reduction.
    """
    def uinit(k, shape, fan_in):
        bound = 1.0 / jnp.sqrt(fan_in)
        return jax.random.uniform(k, shape, jnp.float32, -bound, bound)

    _, k1w, k1b, k2w, k2b, k3w, k3b = jax.random.split(key, 7)
    w1 = uinit(k1w, (d_in, H1), d_in)
    b1 = uinit(k1b, (1, H1), d_in)
    w2 = uinit(k2w, (H1, H2), H1)
    b2 = uinit(k2b, (1, H2), H1)
    w3 = uinit(k3w, (1, H2), H2)   # Linear(256, 1).weight as a row
    b3 = uinit(k3b, (1, 1), H2)
    return (w1, b1, w2, b2, w3, b3)


def _reference_forward(img, params):
    """Pure-JAX reference with matching bf16 matmul operands / f32 accumulate."""
    B = img.shape[0]
    x = img.reshape(B, -1)
    w1, b1, w2, b2, w3, b3 = params
    h1 = jnp.dot(x.astype(jnp.bfloat16), w1.astype(jnp.bfloat16),
                 preferred_element_type=jnp.float32) + b1
    h1 = jnp.where(h1 > 0, h1, 0.2 * h1)
    h2 = jnp.dot(h1.astype(jnp.bfloat16), w2.astype(jnp.bfloat16),
                 preferred_element_type=jnp.float32) + b2
    h2 = jnp.where(h2 > 0, h2, 0.2 * h2)
    logits = jnp.sum(h2 * w3, axis=-1, keepdims=True) + b3
    return jax.nn.sigmoid(logits)


if __name__ == "__main__":
    key = jax.random.PRNGKey(0)
    k_img, k_par = jax.random.split(key)

    # Small shapes consistent with the module: img_shape = (channels, size, size)
    B, C, H, W = 2, 4, 16, 16
    img = jax.random.normal(k_img, (B, C, H, W), jnp.float32)
    params = init_params(k_par, C * H * W)

    # One-time weight prep (bf16 cast + padding) — outside the jitted forward.
    prep = prepare_params(params)

    out = jax.block_until_ready(discriminator_forward(img, prep))
    ref = _reference_forward(img, params)

    assert out.shape == (B, 1), out.shape
    assert jnp.allclose(out, ref, atol=5e-3, rtol=5e-3), (out, ref)

    print("KERNEL_OK")
</pallas_src>

<mosaic_0001>
module attributes {stable_mosaic.version = 11 : i64} {
  func.func @_discriminator_kernel(%arg0: i32, %arg1: i32, %arg2: memref<16x1024xbf16, #tpu.memory_space<vmem>>, %arg3: memref<1024x512xbf16, #tpu.memory_space<vmem>>, %arg4: memref<1x512xf32, #tpu.memory_space<vmem>>, %arg5: memref<512x256xbf16, #tpu.memory_space<vmem>>, %arg6: memref<1x256xf32, #tpu.memory_space<vmem>>, %arg7: memref<1x256xf32, #tpu.memory_space<vmem>>, %arg8: memref<1x1xf32, #tpu.memory_space<vmem>>, %arg9: memref<16x128xf32, #tpu.memory_space<vmem>>, %arg10: memref<16x512xf32, #tpu.memory_space<vmem>>) attributes {dimension_semantics = [#tpu.dimension_semantics<parallel>, #tpu.dimension_semantics<arbitrary>], iteration_bounds = array<i64: 1, 1>, scalar_prefetch = 0 : i64, scratch_operands = 1 : i64, tpu.core_type = #tpu.core_type<tc>, window_params = [{transform_indices = @transform_0, window_bounds = array<i64: 16, 1024>}, {transform_indices = @transform_1, window_bounds = array<i64: 1024, 512>}, {pipeline_mode = #tpu.pipeline_mode<synchronous>, transform_indices = @transform_2, window_bounds = array<i64: 1, 512>}, {pipeline_mode = #tpu.pipeline_mode<synchronous>, transform_indices = @transform_3, window_bounds = array<i64: 512, 256>}, {pipeline_mode = #tpu.pipeline_mode<synchronous>, transform_indices = @transform_4, window_bounds = array<i64: 1, 256>}, {pipeline_mode = #tpu.pipeline_mode<synchronous>, transform_indices = @transform_5, window_bounds = array<i64: 1, 256>}, {pipeline_mode = #tpu.pipeline_mode<synchronous>, transform_indices = @transform_6, window_bounds = array<i64: 1, 1>}, {transform_indices = @transform_7, window_bounds = array<i64: 16, 128>}]} {
    %c0_i32 = arith.constant 0 : i32
    %0 = arith.cmpi eq, %arg1, %c0_i32 : i32
    %1 = arith.extui %0 : i1 to i32
    %c0_i32_0 = arith.constant 0 : i32
    %2 = arith.cmpi ne, %1, %c0_i32_0 : i32
    scf.if %2 {
      %cst_10 = arith.constant 0.000000e+00 : f32
      %12 = vector.broadcast %cst_10 : f32 to vector<16x512xf32>
      %c0_11 = arith.constant 0 : index
      %c0_12 = arith.constant 0 : index
      %13 = vector.load %arg10[%c0_11, %c0_12] : memref<16x512xf32, #tpu.memory_space<vmem>>, vector<16x512xf32>
      tpu.vector_store %arg10[%c0_11, %c0_12], %12 {strides = array<i32>} : memref<16x512xf32, #tpu.memory_space<vmem>>, vector<16x512xf32>,
    } else {
    }
    %c0 = arith.constant 0 : index
    %c0_1 = arith.constant 0 : index
    %3 = vector.load %arg10[%c0, %c0_1] : memref<16x512xf32, #tpu.memory_space<vmem>>, vector<16x512xf32>
    %c0_2 = arith.constant 0 : index
    %c0_3 = arith.constant 0 : index
    %4 = vector.load %arg2[%c0_2, %c0_3] : memref<16x1024xbf16, #tpu.memory_space<vmem>>, vector<16x1024xbf16>
    %c0_4 = arith.constant 0 : index
    %c0_5 = arith.constant 0 : index
    %5 = vector.load %arg3[%c0_4, %c0_5] : memref<1024x512xbf16, #tpu.memory_space<vmem>>, vector<1024x512xbf16>
    %cst = arith.constant dense<0.000000e+00> : vector<16x512xf32>
    %6 = tpu.matmul %4, %5, %cst {dimension_numbers = #tpu.dot_dimension_numbers<[1], [0], [0], [1], [0, 0, 1, 1], [], []>} : vector<16x1024xbf16>, vector<1024x512xbf16>, vector<16x512xf32> -> vector<16x512xf32>
    %7 = arith.addf %3, %6 : vector<16x512xf32>
    %c0_6 = arith.constant 0 : index
    %c0_7 = arith.constant 0 : index
    %8 = vector.load %arg10[%c0_6, %c0_7] : memref<16x512xf32, #tpu.memory_space<vmem>>, vector<16x512xf32>
    tpu.vector_store %arg10[%c0_6, %c0_7], %7 {strides = array<i32>} : memref<16x512xf32, #tpu.memory_space<vmem>>, vector<16x512xf32>,
    %c0_i32_8 = arith.constant 0 : i32
    %9 = arith.cmpi eq, %arg1, %c0_i32_8 : i32
    %10 = arith.extui %9 : i1 to i32
    %c0_i32_9 = arith.constant 0 : i32
    %11 = arith.cmpi ne, %10, %c0_i32_9 : i32
    scf.if %11 {
      %c0_10 = arith.constant 0 : index
      %c0_11 = arith.constant 0 : index
      %12 = vector.load %arg10[%c0_10, %c0_11] : memref<16x512xf32, #tpu.memory_space<vmem>>, vector<16x512xf32>
      %c0_12 = arith.constant 0 : index
      %c0_13 = arith.constant 0 : index
      %13 = vector.load %arg4[%c0_12, %c0_13] : memref<1x512xf32, #tpu.memory_space<vmem>>, vector<1x512xf32>
      %14 = vector.broadcast %13 : vector<1x512xf32> to vector<16x512xf32>
      %15 = arith.addf %12, %14 : vector<16x512xf32>
      %cst_14 = arith.constant 0.000000e+00 : f32
      %16 = vector.broadcast %cst_14 : f32 to vector<16x512xf32>
      %17 = arith.cmpf ogt, %15, %16 : vector<16x512xf32>
      %cst_15 = arith.constant 2.000000e-01 : f32
      %18 = vector.broadcast %cst_15 : f32 to vector<16x512xf32>
      %19 = arith.mulf %18, %15 : vector<16x512xf32>
      %20 = arith.select %17, %15, %19 : vector<16x512xi1>, vector<16x512xf32>
      %21 = arith.truncf %20 : vector<16x512xf32> to vector<16x512xbf16>
      %c0_16 = arith.constant 0 : index
      %c0_17 = arith.constant 0 : index
      %22 = vector.load %arg5[%c0_16, %c0_17] : memref<512x256xbf16, #tpu.memory_space<vmem>>, vector<512x256xbf16>
      %cst_18 = arith.constant dense<0.000000e+00> : vector<16x256xf32>
      %23 = tpu.matmul %21, %22, %cst_18 {dimension_numbers = #tpu.dot_dimension_numbers<[1], [0], [0], [1], [0, 0, 1, 1], [], []>} : vector<16x512xbf16>, vector<512x256xbf16>, vector<16x256xf32> -> vector<16x256xf32>
      %c0_19 = arith.constant 0 : index
      %c0_20 = arith.constant 0 : index
      %24 = vector.load %arg6[%c0_19, %c0_20] : memref<1x256xf32, #tpu.memory_space<vmem>>, vector<1x256xf32>
      %25 = vector.broadcast %24 : vector<1x256xf32> to vector<16x256xf32>
      %26 = arith.addf %23, %25 : vector<16x256xf32>
      %cst_21 = arith.constant 0.000000e+00 : f32
      %27 = vector.broadcast %cst_21 : f32 to vector<16x256xf32>
      %28 = arith.cmpf ogt, %26, %27 : vector<16x256xf32>
      %cst_22 = arith.constant 2.000000e-01 : f32
      %29 = vector.broadcast %cst_22 : f32 to vector<16x256xf32>
      %30 = arith.mulf %29, %26 : vector<16x256xf32>
      %31 = arith.select %28, %26, %30 : vector<16x256xi1>, vector<16x256xf32>
      %c0_23 = arith.constant 0 : index
      %c0_24 = arith.constant 0 : index
      %32 = vector.load %arg7[%c0_23, %c0_24] : memref<1x256xf32, #tpu.memory_space<vmem>>, vector<1x256xf32>
      %33 = vector.broadcast %32 : vector<1x256xf32> to vector<16x256xf32>
      %34 = arith.mulf %31, %33 : vector<16x256xf32>
      %cst_25 = arith.constant dense<0.000000e+00> : vector<16xf32>
      %35 = vector.multi_reduction <add>, %34, %cst_25 [1] : vector<16x256xf32> to vector<16xf32>
      %36 = vector.shape_cast %35 : vector<16xf32> to vector<16x1xf32>
      %c0_26 = arith.constant 0 : index
      %c0_27 = arith.constant 0 : index
      %37 = vector.load %arg8[%c0_26, %c0_27] : memref<1x1xf32, #tpu.memory_space<vmem>>, vector<1x1xf32>
      %38 = vector.broadcast %37 : vector<1x1xf32> to vector<16x1xf32>
      %39 = arith.addf %36, %38 : vector<16x1xf32>
      %40 = arith.negf %39 : vector<16x1xf32>
      %41 = math.exp %40 : vector<16x1xf32>
      %cst_28 = arith.constant 1.000000e+00 : f32
      %42 = vector.broadcast %cst_28 : f32 to vector<16x1xf32>
      %43 = arith.addf %42, %41 : vector<16x1xf32>
      %44 = arith.divf %42, %43 : vector<16x1xf32>
      %45 = vector.shape_cast %44 : vector<16x1xf32> to vector<16x1xf32>
      %46 = vector.broadcast %45 : vector<16x1xf32> to vector<16x128xf32>
      %c0_29 = arith.constant 0 : index
      %c0_30 = arith.constant 0 : index
      %47 = vector.load %arg9[%c0_29, %c0_30] : memref<16x128xf32, #tpu.memory_space<vmem>>, vector<16x128xf32>
      tpu.vector_store %arg9[%c0_29, %c0_30], %46 {strides = array<i32>} : memref<16x128xf32, #tpu.memory_space<vmem>>, vector<16x128xf32>,
    } else {
    }
    return
  }
  func.func @transform_0(%arg0: i32, %arg1: i32) -> (i32, i32) {
    %c0_i32 = arith.constant 0 : i32
    return %arg0, %arg1 : i32, i32
  }
  func.func @transform_1(%arg0: i32, %arg1: i32) -> (i32, i32) {
    %c0_i32 = arith.constant 0 : i32
    %c0_i32_0 = arith.constant 0 : i32
    return %arg1, %c0_i32 : i32, i32
  }
  func.func @transform_2(%arg0: i32, %arg1: i32) -> (i32, i32) {
    %c0_i32 = arith.constant 0 : i32
    %c0_i32_0 = arith.constant 0 : i32
    %c0_i32_1 = arith.constant 0 : i32
    return %c0_i32, %c0_i32_0 : i32, i32
  }
  func.func @transform_3(%arg0: i32, %arg1: i32) -> (i32, i32) {
    %c0_i32 = arith.constant 0 : i32
    %c0_i32_0 = arith.constant 0 : i32
    %c0_i32_1 = arith.constant 0 : i32
    return %c0_i32, %c0_i32_0 : i32, i32
  }
  func.func @transform_4(%arg0: i32, %arg1: i32) -> (i32, i32) {
    %c0_i32 = arith.constant 0 : i32
    %c0_i32_0 = arith.constant 0 : i32
    %c0_i32_1 = arith.constant 0 : i32
    return %c0_i32, %c0_i32_0 : i32, i32
  }
  func.func @transform_5(%arg0: i32, %arg1: i32) -> (i32, i32) {
    %c0_i32 = arith.constant 0 : i32
    %c0_i32_0 = arith.constant 0 : i32
    %c0_i32_1 = arith.constant 0 : i32
    return %c0_i32, %c0_i32_0 : i32, i32
  }
  func.func @transform_6(%arg0: i32, %arg1: i32) -> (i32, i32) {
    %c0_i32 = arith.constant 0 : i32
    %c0_i32_0 = arith.constant 0 : i32
    %c0_i32_1 = arith.constant 0 : i32
    return %c0_i32, %c0_i32_0 : i32, i32
  }
  func.func @transform_7(%arg0: i32, %arg1: i32) -> (i32, i32) {
    %c0_i32 = arith.constant 0 : i32
    %c0_i32_0 = arith.constant 0 : i32
    return %arg0, %c0_i32 : i32, i32
  }
}

</mosaic_0001>

<llo_original>
// kernel: discriminator_forward.1
$region0: #{discriminator_forward.1}
  #allocation0 [shape = 'u32[]', space=smem, size = 0x4, offset = 0x4, fixed_abs, tag = 'smem constant byte address 0x4 - core index']
  #allocation1 [shape = 'u32[144,128]{1,0:T(1,128)}', space=vmem, size = 0x12000, scoped, tag = 'internal scratch']
  #allocation2 [shape = 'f32[16,512]{1,0:T(8,128)}', space=vmem, size = 0x8000, scoped, tag = 'scratch operand']
  #allocation3 [shape = 'f32[1,1]{1,0:T(1,128)S(1)}', space=vmem, size = 0x200, scoped, tag = 'scoped memory for discriminator_forward.1']
  %s0 = inlined_call_operand.vmem [shape: bf16[16,1024], index: 0, kind: input, shape index: {}]
  %s1 = inlined_call_operand.hbm [shape: bf16[1024,512], index: 1, kind: input, shape index: {}]
  %s2 = inlined_call_operand.vmem [shape: f32[1,512], index: 2, kind: input, shape index: {}]
  %s3 = inlined_call_operand.hbm [shape: bf16[512,256], index: 3, kind: input, shape index: {}]
  %s4 = inlined_call_operand.vmem [shape: f32[1,256], index: 4, kind: input, shape index: {}]
  %s5 = inlined_call_operand.vmem [shape: f32[1,256], index: 5, kind: input, shape index: {}]
  %s6 = inlined_call_operand.<no memory space> [shape: f32[1,1], index: 6, kind: input, shape index: {}]
  %s7 = inlined_call_operand.vmem [shape: f32[16,128], index: 7, kind: output, shape index: {}]
  %s8 = sld [smem:[#allocation0]]
  $region54: #{discriminator_forward.1} parent=0
    _
  %s10 = ssub.s32 1, %s8
  %s11 = scalar_select 0, %s10, %s8
  %v12 = vstv %s6
  %13 = vst [vmem:[#allocation3] sm:$0x1] %v12
  $region1: #{discriminator_forward.1} parent=0
    #allocation4 [shape = 'u8[1048576]{0}', space=vmem, size = 0x100000, scoped, tag = 'input window, operand 1, single buffered']
    #allocation5 [shape = 's32[1]{0}', space=sflag, size = 0x4, scoped, tag = 'scoped memory for discriminator_forward.1']
    #allocation6 [shape = 'u8[262144]{0}', space=vmem, size = 0x40000, scoped, tag = 'input window, operand 3, single buffered']
    #allocation7 [shape = 's32[1]{0}', space=sflag, size = 0x4, scoped, tag = 'scoped memory for discriminator_forward.1']
    %14 = vsyncpa [#allocation5], 0
    %15 = vsyncpa [#allocation7], 0
    // Predicated region
    $region2: #{discriminator_forward.1} parent=1 // pred_check
      _
    $region3: #{discriminator_forward.1} parent=1 // pred_check_branch
      %17 = sbr.rel (0) target = $region5
    $region4: #{discriminator_forward.1} parent=1 // pred_region
      _
    $region5: #{discriminator_forward.1} parent=1 // pred_fallthru
      _
    // Predicated region
    $region6: #{discriminator_forward.1} parent=1 // pred_check
      _
    $region7: #{discriminator_forward.1} parent=1 // pred_check_branch
      %19 = sbr.rel (0) target = $region9
    $region8: #{discriminator_forward.1} parent=1 // pred_region
      %s21 = ssub.s32 32768, 32768
      %22 = vsyncadd [#allocation5], %s21
      %s23 = sshll.u32 [#allocation4], 4
      %s24 = int_to_ptr.vmem [resolvable:$true] %s23
      %29 = dma.hbm_to_vmem [thread:$0]  %s1, 32768, %s24, [#allocation5], 256, 256, 16
    $region9: #{discriminator_forward.1} parent=1 // pred_fallthru
      _
    // Predicated region
    $region10: #{discriminator_forward.1} parent=1 // pred_check
      _
    $region11: #{discriminator_forward.1} parent=1 // pred_check_branch
      %31 = sbr.rel (0) target = $region13
    $region12: #{discriminator_forward.1} parent=1 // pred_region
      _
    $region13: #{discriminator_forward.1} parent=1 // pred_fallthru
      _
    // Predicated region
    $region14: #{discriminator_forward.1} parent=1 // pred_check
      _
    $region15: #{discriminator_forward.1} parent=1 // pred_check_branch
      %33 = sbr.rel (0) target = $region17
    $region16: #{discriminator_forward.1} parent=1 // pred_region
      %s35 = ssub.s32 8192, 8192
      %36 = vsyncadd [#allocation7], %s35
      %s37 = sshll.u32 [#allocation6], 4
      %s38 = int_to_ptr.vmem [resolvable:$true] %s37
      %43 = dma.hbm_to_vmem [thread:$0]  %s3, 8192, %s38, [#allocation7], 128, 128, 8
    $region17: #{discriminator_forward.1} parent=1 // pred_fallthru
      _
    // Predicated region
    $region18: #{discriminator_forward.1} parent=1 // pred_check
      _
    $region19: #{discriminator_forward.1} parent=1 // pred_check_branch
      %45 = sbr.rel (0) target = $region21
    $region20: #{discriminator_forward.1} parent=1 // pred_region
      _
    $region21: #{discriminator_forward.1} parent=1 // pred_fallthru
      _
    // Predicated region
    $region22: #{discriminator_forward.1} parent=1 // pred_check
      _
    $region23: #{discriminator_forward.1} parent=1 // pred_check_branch
      %47 = sbr.rel (0) target = $region25
    $region24: #{discriminator_forward.1} parent=1 // pred_region
      _
    $region25: #{discriminator_forward.1} parent=1 // pred_fallthru
      _
    // Predicated region
    $region26: #{discriminator_forward.1} parent=1 // pred_check
      _
    $region27: #{discriminator_forward.1} parent=1 // pred_check_branch
      %49 = sbr.rel (0) target = $region29
    $region28: #{discriminator_forward.1} parent=1 // pred_region
      _
    $region29: #{discriminator_forward.1} parent=1 // pred_fallthru
      _
    // Predicated region
    $region30: #{discriminator_forward.1} parent=1 // pred_check
      _
    $region31: #{discriminator_forward.1} parent=1 // pred_check_branch
      %51 = sbr.rel (0) target = $region33
    $region32: #{discriminator_forward.1} parent=1 // pred_region
      %52 = dma.done [#allocation5], 32768
    $region33: #{discriminator_forward.1} parent=1 // pred_fallthru
      _
    // Predicated region
    $region34: #{discriminator_forward.1} parent=1 // pred_check
      _
    $region35: #{discriminator_forward.1} parent=1 // pred_check_branch
      %54 = sbr.rel (0) target = $region37
    $region36: #{discriminator_forward.1} parent=1 // pred_region
      %55 = dma.done [#allocation7], 8192
    $region37: #{discriminator_forward.1} parent=1 // pred_fallthru
      _
    %p56 = scmp.eq.s32.totalorder 0, 0
    // Predicated region
    $region38: #{discriminator_forward.1} parent=1 // pred_check
      %p57 = pneg %p56
    $region39: #{discriminator_forward.1} parent=1 // pred_check_branch
      %59 = sbr.rel (%p57) target = $region41
    $region40: #{discriminator_forward.1} parent=1 // pred_region
      %60 = vst [vmem:[#allocation2] sm:$0xff] 0.0
      %61 = vst [vmem:[#allocation2 + $0x8] sm:$0xff] 0.0
      %62 = vst [vmem:[#allocation2 + $0x10] sm:$0xff] 0.0
      %63 = vst [vmem:[#allocation2 + $0x18] sm:$0xff] 0.0
      %64 = vst [vmem:[#allocation2 + $0x20] sm:$0xff] 0.0
      %65 = vst [vmem:[#allocation2 + $0x28] sm:$0xff] 0.0
      %66 = vst [vmem:[#allocation2 + $0x30] sm:$0xff] 0.0
      %67 = vst [vmem:[#allocation2 + $0x38] sm:$0xff] 0.0
    $region41: #{discriminator_forward.1} parent=1 // pred_fallthru
      _
    %v68 = vld [vmem:[#allocation2] sm:$0xff]
    %v69 = vld [vmem:[#allocation2 + $0x8] sm:$0xff]
    %v70 = vld [vmem:[#allocation2 + $0x10] sm:$0xff]
    %v71 = vld [vmem:[#allocation2 + $0x18] sm:$0xff]
    %v72 = vld [vmem:[#allocation2 + $0x20] sm:$0xff]
    %v73 = vld [vmem:[#allocation2 + $0x28] sm:$0xff]
    %v74 = vld [vmem:[#allocation2 + $0x30] sm:$0xff]
    %v75 = vld [vmem:[#allocation2 + $0x38] sm:$0xff]
    %v76 = vld [vmem:[%s0] sm:$0xff]
    %v77 = vld [vmem:[%s0 + $0x8] sm:$0xff]
    %v78 = vld [vmem:[%s0 + $0x10] sm:$0xff]
    %v79 = vld [vmem:[%s0 + $0x18] sm:$0xff]
    %v80 = vld [vmem:[%s0 + $0x20] sm:$0xff]
    %v81 = vld [vmem:[%s0 + $0x28] sm:$0xff]
    %v82 = vld [vmem:[%s0 + $0x30] sm:$0xff]
    %v83 = vld [vmem:[%s0 + $0x38] sm:$0xff]
    %v84 = vld [vmem:[#allocation4] sm:$0xff]
    %v85 = vld [vmem:[#allocation4 + $0x8] sm:$0xff]
    %v86 = vld [vmem:[#allocation4 + $0x10] sm:$0xff]
    %v87 = vld [vmem:[#allocation4 + $0x18] sm:$0xff]
    %v88 = vld [vmem:[#allocation4 + $0x20] sm:$0xff]
    %v89 = vld [vmem:[#allocation4 + $0x28] sm:$0xff]
    %v90 = vld [vmem:[#allocation4 + $0x30] sm:$0xff]
    %v91 = vld [vmem:[#allocation4 + $0x38] sm:$0xff]
    %v92 = vld [vmem:[#allocation4 + $0x40] sm:$0xff]
    %v93 = vld [vmem:[#allocation4 + $0x48] sm:$0xff]
    %v94 = vld [vmem:[#allocation4 + $0x50] sm:$0xff]
    %v95 = vld [vmem:[#allocation4 + $0x58] sm:$0xff]
    %v96 = vld [vmem:[#allocation4 + $0x60] sm:$0xff]
    %v97 = vld [vmem:[#allocation4 + $0x68] sm:$0xff]
    %v98 = vld [vmem:[#allocation4 + $0x70] sm:$0xff]
    %v99 = vld [vmem:[#allocation4 + $0x78] sm:$0xff]
    %v100 = vld [vmem:[#allocation4 + $0x80] sm:$0xff]
    %v101 = vld [vmem:[#allocation4 + $0x88] sm:$0xff]
    %v102 = vld [vmem:[#allocation4 + $0x90] sm:$0xff]
    %v103 = vld [vmem:[#allocation4 + $0x98] sm:$0xff]
    %v104 = vld [vmem:[#allocation4 + $0xa0] sm:$0xff]
    %v105 = vld [vmem:[#allocation4 + $0xa8] sm:$0xff]
    %v106 = vld [vmem:[#allocation4 + $0xb0] sm:$0xff]
    %v107 = vld [vmem:[#allocation4 + $0xb8] sm:$0xff]
    %v108 = vld [vmem:[#allocation4 + $0xc0] sm:$0xff]
    %v109 = vld [vmem:[#allocation4 + $0xc8] sm:$0xff]
    %v110 = vld [vmem:[#allocation4 + $0xd0] sm:$0xff]
    %v111 = vld [vmem:[#allocation4 + $0xd8] sm:$0xff]
    %v112 = vld [vmem:[#allocation4 + $0xe0] sm:$0xff]
    %v113 = vld [vmem:[#allocation4 + $0xe8] sm:$0xff]
    %v114 = vld [vmem:[#allocation4 + $0xf0] sm:$0xff]
    %v115 = vld [vmem:[#allocation4 + $0xf8] sm:$0xff]
    %v116 = vld [vmem:[#allocation4 + $0x100] sm:$0xff]
    %v117 = vld [vmem:[#allocation4 + $0x108] sm:$0xff]
    %v118 = vld [vmem:[#allocation4 + $0x110] sm:$0xff]
    %v119 = vld [vmem:[#allocation4 + $0x118] sm:$0xff]
    %v120 = vld [vmem:[#allocation4 + $0x120] sm:$0xff]
    %v121 = vld [vmem:[#allocation4 + $0x128] sm:$0xff]
    %v122 = vld [vmem:[#allocation4 + $0x130] sm:$0xff]
    %v123 = vld [vmem:[#allocation4 + $0x138] sm:$0xff]
    %v124 = vld [vmem:[#allocation4 + $0x140] sm:$0xff]
    %v125 = vld [vmem:[#allocation4 + $0x148] sm:$0xff]
    %v126 = vld [vmem:[#allocation4 + $0x150] sm:$0xff]
    %v127 = vld [vmem:[#allocation4 + $0x158] sm:$0xff]
    %v128 = vld [vmem:[#allocation4 + $0x160] sm:$0xff]
    %v129 = vld [vmem:[#allocation4 + $0x168] sm:$0xff]
    %v130 = vld [vmem:[#allocation4 + $0x170] sm:$0xff]
    %v131 = vld [vmem:[#allocation4 + $0x178] sm:$0xff]
    %v132 = vld [vmem:[#allocation4 + $0x180] sm:$0xff]
    %v133 = vld [vmem:[#allocation4 + $0x188] sm:$0xff]
    %v134 = vld [vmem:[#allocation4 + $0x190] sm:$0xff]
    %v135 = vld [vmem:[#allocation4 + $0x198] sm:$0xff]
    %v136 = vld [vmem:[#allocation4 + $0x1a0] sm:$0xff]
    %v137 = vld [vmem:[#allocation4 + $0x1a8] sm:$0xff]
    %v138 = vld [vmem:[#allocation4 + $0x1b0] sm:$0xff]
    %v139 = vld [vmem:[#allocation4 + $0x1b8] sm:$0xff]
    %v140 = vld [vmem:[#allocation4 + $0x1c0] sm:$0xff]
    %v141 = vld [vmem:[#allocation4 + $0x1c8] sm:$0xff]
    %v142 = vld [vmem:[#allocation4 + $0x1d0] sm:$0xff]
    %v143 = vld [vmem:[#allocation4 + $0x1d8] sm:$0xff]
    %v144 = vld [vmem:[#allocation4 + $0x1e0] sm:$0xff]
    %v145 = vld [vmem:[#allocation4 + $0x1e8] sm:$0xff]
    %v146 = vld [vmem:[#allocation4 + $0x1f0] sm:$0xff]
    %v147 = vld [vmem:[#allocation4 + $0x1f8] sm:$0xff]
    %v148 = vld [vmem:[#allocation4 + $0x200] sm:$0xff]
    %v149 = vld [vmem:[#allocation4 + $0x208] sm:$0xff]
    %v150 = vld [vmem:[#allocation4 + $0x210] sm:$0xff]
    %v151 = vld [vmem:[#allocation4 + $0x218] sm:$0xff]
    %v152 = vld [vmem:[#allocation4 + $0x220] sm:$0xff]
    %v153 = vld [vmem:[#allocation4 + $0x228] sm:$0xff]
    %v154 = vld [vmem:[#allocation4 + $0x230] sm:$0xff]
    %v155 = vld [vmem:[#allocation4 + $0x238] sm:$0xff]
    %v156 = vld [vmem:[#allocation4 + $0x240] sm:$0xff]
    %v157 = vld [vmem:[#allocation4 + $0x248] sm:$0xff]
    %v158 = vld [vmem:[#allocation4 + $0x250] sm:$0xff]
    %v159 = vld [vmem:[#allocation4 + $0x258] sm:$0xff]
    %v160 = vld [vmem:[#allocation4 + $0x260] sm:$0xff]
    %v161 = vld [vmem:[#allocation4 + $0x268] sm:$0xff]
    %v162 = vld [vmem:[#allocation4 + $0x270] sm:$0xff]
    %v163 = vld [vmem:[#allocation4 + $0x278] sm:$0xff]
    %v164 = vld [vmem:[#allocation4 + $0x280] sm:$0xff]
    %v165 = vld [vmem:[#allocation4 + $0x288] sm:$0xff]
    %v166 = vld [vmem:[#allocation4 + $0x290] sm:$0xff]
    %v167 = vld [vmem:[#allocation4 + $0x298] sm:$0xff]
    %v168 = vld [vmem:[#allocation4 + $0x2a0] sm:$0xff]
    %v169 = vld [vmem:[#allocation4 + $0x2a8] sm:$0xff]
    %v170 = vld [vmem:[#allocation4 + $0x2b0] sm:$0xff]
    %v171 = vld [vmem:[#allocation4 + $0x2b8] sm:$0xff]
    %v172 = vld [vmem:[#allocation4 + $0x2c0] sm:$0xff]
    %v173 = vld [vmem:[#allocation4 + $0x2c8] sm:$0xff]
    %v174 = vld [vmem:[#allocation4 + $0x2d0] sm:$0xff]
    %v175 = vld [vmem:[#allocation4 + $0x2d8] sm:$0xff]
    %v176 = vld [vmem:[#allocation4 + $0x2e0] sm:$0xff]
    %v177 = vld [vmem:[#allocation4 + $0x2e8] sm:$0xff]
    %v178 = vld [vmem:[#allocation4 + $0x2f0] sm:$0xff]
    %v179 = vld [vmem:[#allocation4 + $0x2f8] sm:$0xff]
    %v180 = vld [vmem:[#allocation4 + $0x300] sm:$0xff]
    %v181 = vld [vmem:[#allocation4 + $0x308] sm:$0xff]
    %v182 = vld [vmem:[#allocation4 + $0x310] sm:$0xff]
    %v183 = vld [vmem:[#allocation4 + $0x318] sm:$0xff]
    %v184 = vld [vmem:[#allocation4 + $0x320] sm:$0xff]
    %v185 = vld [vmem:[#allocation4 + $0x328] sm:$0xff]
    %v186 = vld [vmem:[#allocation4 + $0x330] sm:$0xff]
    %v187 = vld [vmem:[#allocation4 + $0x338] sm:$0xff]
    %v188 = vld [vmem:[#allocation4 + $0x340] sm:$0xff]
    %v189 = vld [vmem:[#allocation4 + $0x348] sm:$0xff]
    %v190 = vld [vmem:[#allocation4 + $0x350] sm:$0xff]
    %v191 = vld [vmem:[#allocation4 + $0x358] sm:$0xff]
    %v192 = vld [vmem:[#allocation4 + $0x360] sm:$0xff]
    %v193 = vld [vmem:[#allocation4 + $0x368] sm:$0xff]
    %v194 = vld [vmem:[#allocation4 + $0x370] sm:$0xff]
    %v195 = vld [vmem:[#allocation4 + $0x378] sm:$0xff]
    %v196 = vld [vmem:[#allocation4 + $0x380] sm:$0xff]
    %v197 = vld [vmem:[#allocation4 + $0x388] sm:$0xff]
    %v198 = vld [vmem:[#allocation4 + $0x390] sm:$0xff]
    %v199 = vld [vmem:[#allocation4 + $0x398] sm:$0xff]
    %v200 = vld [vmem:[#allocation4 + $0x3a0] sm:$0xff]
    %v201 = vld [vmem:[#allocation4 + $0x3a8] sm:$0xff]
    %v202 = vld [vmem:[#allocation4 + $0x3b0] sm:$0xff]
    %v203 = vld [vmem:[#allocation4 + $0x3b8] sm:$0xff]
    %v204 = vld [vmem:[#allocation4 + $0x3c0] sm:$0xff]
    %v205 = vld [vmem:[#allocation4 + $0x3c8] sm:$0xff]
    %v206 = vld [vmem:[#allocation4 + $0x3d0] sm:$0xff]
    %v207 = vld [vmem:[#allocation4 + $0x3d8] sm:$0xff]
    %v208 = vld [vmem:[#allocation4 + $0x3e0] sm:$0xff]
    %v209 = vld [vmem:[#allocation4 + $0x3e8] sm:$0xff]
    %v210 = vld [vmem:[#allocation4 + $0x3f0] sm:$0xff]
    %v211 = vld [vmem:[#allocation4 + $0x3f8] sm:$0xff]
    %v212 = vld [vmem:[#allocation4 + $0x400] sm:$0xff]
    %v213 = vld [vmem:[#allocation4 + $0x408] sm:$0xff]
    %v214 = vld [vmem:[#allocation4 + $0x410] sm:$0xff]
    %v215 = vld [vmem:[#allocation4 + $0x418] sm:$0xff]
    %v216 = vld [vmem:[#allocation4 + $0x420] sm:$0xff]
    %v217 = vld [vmem:[#allocation4 + $0x428] sm:$0xff]
    %v218 = vld [vmem:[#allocation4 + $0x430] sm:$0xff]
    %v219 = vld [vmem:[#allocation4 + $0x438] sm:$0xff]
    %v220 = vld [vmem:[#allocation4 + $0x440] sm:$0xff]
    %v221 = vld [vmem:[#allocation4 + $0x448] sm:$0xff]
    %v222 = vld [vmem:[#allocation4 + $0x450] sm:$0xff]
    %v223 = vld [vmem:[#allocation4 + $0x458] sm:$0xff]
    %v224 = vld [vmem:[#allocation4 + $0x460] sm:$0xff]
    %v225 = vld [vmem:[#allocation4 + $0x468] sm:$0xff]
    %v226 = vld [vmem:[#allocation4 + $0x470] sm:$0xff]
    %v227 = vld [vmem:[#allocation4 + $0x478] sm:$0xff]
    %v228 = vld [vmem:[#allocation4 + $0x480] sm:$0xff]
    %v229 = vld [vmem:[#allocation4 + $0x488] sm:$0xff]
    %v230 = vld [vmem:[#allocation4 + $0x490] sm:$0xff]
    %v231 = vld [vmem:[#allocation4 + $0x498] sm:$0xff]
    %v232 = vld [vmem:[#allocation4 + $0x4a0] sm:$0xff]
    %v233 = vld [vmem:[#allocation4 + $0x4a8] sm:$0xff]
    %v234 = vld [vmem:[#allocation4 + $0x4b0] sm:$0xff]
    %v235 = vld [vmem:[#allocation4 + $0x4b8] sm:$0xff]
    %v236 = vld [vmem:[#allocation4 + $0x4c0] sm:$0xff]
    %v237 = vld [vmem:[#allocation4 + $0x4c8] sm:$0xff]
    %v238 = vld [vmem:[#allocation4 + $0x4d0] sm:$0xff]
    %v239 = vld [vmem:[#allocation4 + $0x4d8] sm:$0xff]
    %v240 = vld [vmem:[#allocation4 + $0x4e0] sm:$0xff]
    %v241 = vld [vmem:[#allocation4 + $0x4e8] sm:$0xff]
    %v242 = vld [vmem:[#allocation4 + $0x4f0] sm:$0xff]
    %v243 = vld [vmem:[#allocation4 + $0x4f8] sm:$0xff]
    %v244 = vld [vmem:[#allocation4 + $0x500] sm:$0xff]
    %v245 = vld [vmem:[#allocation4 + $0x508] sm:$0xff]
    %v246 = vld [vmem:[#allocation4 + $0x510] sm:$0xff]
    %v247 = vld [vmem:[#allocation4 + $0x518] sm:$0xff]
    %v248 = vld [vmem:[#allocation4 + $0x520] sm:$0xff]
    %v249 = vld [vmem:[#allocation4 + $0x528] sm:$0xff]
    %v250 = vld [vmem:[#allocation4 + $0x530] sm:$0xff]
    %v251 = vld [vmem:[#allocation4 + $0x538] sm:$0xff]
    %v252 = vld [vmem:[#allocation4 + $0x540] sm:$0xff]
    %v253 = vld [vmem:[#allocation4 + $0x548] sm:$0xff]
    %v254 = vld [vmem:[#allocation4 + $0x550] sm:$0xff]
    %v255 = vld [vmem:[#allocation4 + $0x558] sm:$0xff]
    %v256 = vld [vmem:[#allocation4 + $0x560] sm:$0xff]
    %v257 = vld [vmem:[#allocation4 + $0x568] sm:$0xff]
    %v258 = vld [vmem:[#allocation4 + $0x570] sm:$0xff]
    %v259 = vld [vmem:[#allocation4 + $0x578] sm:$0xff]
    %v260 = vld [vmem:[#allocation4 + $0x580] sm:$0xff]
    %v261 = vld [vmem:[#allocation4 + $0x588] sm:$0xff]
    %v262 = vld [vmem:[#allocation4 + $0x590] sm:$0xff]
    %v263 = vld [vmem:[#allocation4 + $0x598] sm:$0xff]
    %v264 = vld [vmem:[#allocation4 + $0x5a0] sm:$0xff]
    %v265 = vld [vmem:[#allocation4 + $0x5a8] sm:$0xff]
    %v266 = vld [vmem:[#allocation4 + $0x5b0] sm:$0xff]
    %v267 = vld [vmem:[#allocation4 + $0x5b8] sm:$0xff]
    %v268 = vld [vmem:[#allocation4 + $0x5c0] sm:$0xff]
    %v269 = vld [vmem:[#allocation4 + $0x5c8] sm:$0xff]
    %v270 = vld [vmem:[#allocation4 + $0x5d0] sm:$0xff]
    %v271 = vld [vmem:[#allocation4 + $0x5d8] sm:$0xff]
    %v272 = vld [vmem:[#allocation4 + $0x5e0] sm:$0xff]
    %v273 = vld [vmem:[#allocation4 + $0x5e8] sm:$0xff]
    %v274 = vld [vmem:[#allocation4 + $0x5f0] sm:$0xff]
    %v275 = vld [vmem:[#allocation4 + $0x5f8] sm:$0xff]
    %v276 = vld [vmem:[#allocation4 + $0x600] sm:$0xff]
    %v277 = vld [vmem:[#allocation4 + $0x608] sm:$0xff]
    %v278 = vld [vmem:[#allocation4 + $0x610] sm:$0xff]
    %v279 = vld [vmem:[#allocation4 + $0x618] sm:$0xff]
    %v280 = vld [vmem:[#allocation4 + $0x620] sm:$0xff]
    %v281 = vld [vmem:[#allocation4 + $0x628] sm:$0xff]
    %v282 = vld [vmem:[#allocation4 + $0x630] sm:$0xff]
    %v283 = vld [vmem:[#allocation4 + $0x638] sm:$0xff]
    %v284 = vld [vmem:[#allocation4 + $0x640] sm:$0xff]
    %v285 = vld [vmem:[#allocation4 + $0x648] sm:$0xff]
    %v286 = vld [vmem:[#allocation4 + $0x650] sm:$0xff]
    %v287 = vld [vmem:[#allocation4 + $0x658] sm:$0xff]
    %v288 = vld [vmem:[#allocation4 + $0x660] sm:$0xff]
    %v289 = vld [vmem:[#allocation4 + $0x668] sm:$0xff]
    %v290 = vld [vmem:[#allocation4 + $0x670] sm:$0xff]
    %v291 = vld [vmem:[#allocation4 + $0x678] sm:$0xff]
    %v292 = vld [vmem:[#allocation4 + $0x680] sm:$0xff]
    %v293 = vld [vmem:[#allocation4 + $0x688] sm:$0xff]
    %v294 = vld [vmem:[#allocation4 + $0x690] sm:$0xff]
    %v295 = vld [vmem:[#allocation4 + $0x698] sm:$0xff]
    %v296 = vld [vmem:[#allocation4 + $0x6a0] sm:$0xff]
    %v297 = vld [vmem:[#allocation4 + $0x6a8] sm:$0xff]
    %v298 = vld [vmem:[#allocation4 + $0x6b0] sm:$0xff]
    %v299 = vld [vmem:[#allocation4 + $0x6b8] sm:$0xff]
    %v300 = vld [vmem:[#allocation4 + $0x6c0] sm:$0xff]
    %v301 = vld [vmem:[#allocation4 + $0x6c8] sm:$0xff]
    %v302 = vld [vmem:[#allocation4 + $0x6d0] sm:$0xff]
    %v303 = vld [vmem:[#allocation4 + $0x6d8] sm:$0xff]
    %v304 = vld [vmem:[#allocation4 + $0x6e0] sm:$0xff]
    %v305 = vld [vmem:[#allocation4 + $0x6e8] sm:$0xff]
    %v306 = vld [vmem:[#allocation4 + $0x6f0] sm:$0xff]
    %v307 = vld [vmem:[#allocation4 + $0x6f8] sm:$0xff]
    %v308 = vld [vmem:[#allocation4 + $0x700] sm:$0xff]
    %v309 = vld [vmem:[#allocation4 + $0x708] sm:$0xff]
    %v310 = vld [vmem:[#allocation4 + $0x710] sm:$0xff]
    %v311 = vld [vmem:[#allocation4 + $0x718] sm:$0xff]
    %v312 = vld [vmem:[#allocation4 + $0x720] sm:$0xff]
    %v313 = vld [vmem:[#allocation4 + $0x728] sm:$0xff]
    %v314 = vld [vmem:[#allocation4 + $0x730] sm:$0xff]
    %v315 = vld [vmem:[#allocation4 + $0x738] sm:$0xff]
    %v316 = vld [vmem:[#allocation4 + $0x740] sm:$0xff]
    %v317 = vld [vmem:[#allocation4 + $0x748] sm:$0xff]
    %v318 = vld [vmem:[#allocation4 + $0x750] sm:$0xff]
    %v319 = vld [vmem:[#allocation4 + $0x758] sm:$0xff]
    %v320 = vld [vmem:[#allocation4 + $0x760] sm:$0xff]
    %v321 = vld [vmem:[#allocation4 + $0x768] sm:$0xff]
    %v322 = vld [vmem:[#allocation4 + $0x770] sm:$0xff]
    %v323 = vld [vmem:[#allocation4 + $0x778] sm:$0xff]
    %v324 = vld [vmem:[#allocation4 + $0x780] sm:$0xff]
    %v325 = vld [vmem:[#allocation4 + $0x788] sm:$0xff]
    %v326 = vld [vmem:[#allocation4 + $0x790] sm:$0xff]
    %v327 = vld [vmem:[#allocation4 + $0x798] sm:$0xff]
    %v328 = vld [vmem:[#allocation4 + $0x7a0] sm:$0xff]
    %v329 = vld [vmem:[#allocation4 + $0x7a8] sm:$0xff]
    %v330 = vld [vmem:[#allocation4 + $0x7b0] sm:$0xff]
    %v331 = vld [vmem:[#allocation4 + $0x7b8] sm:$0xff]
    %v332 = vld [vmem:[#allocation4 + $0x7c0] sm:$0xff]
    %v333 = vld [vmem:[#allocation4 + $0x7c8] sm:$0xff]
    %v334 = vld [vmem:[#allocation4 + $0x7d0] sm:$0xff]
    %v335 = vld [vmem:[#allocation4 + $0x7d8] sm:$0xff]
    %v336 = vld [vmem:[#allocation4 + $0x7e0] sm:$0xff]
    %v337 = vld [vmem:[#allocation4 + $0x7e8] sm:$0xff]
    %v338 = vld [vmem:[#allocation4 + $0x7f0] sm:$0xff]
    %v339 = vld [vmem:[#allocation4 + $0x7f8] sm:$0xff]
    %v348 = vunpack.c.l.b16 %v76
    %v349 = vunpack.c.h.b16 %v76
    %v350 = vunpack.c.l.b16 %v77
    %v351 = vunpack.c.h.b16 %v77
    %v352 = vunpack.c.l.b16 %v78
    %v353 = vunpack.c.h.b16 %v78
    %v354 = vunpack.c.l.b16 %v79
    %v355 = vunpack.c.h.b16 %v79
    %v356 = vunpack.c.l.b16 %v80
    %v357 = vunpack.c.h.b16 %v80
    %v358 = vunpack.c.l.b16 %v81
    %v359 = vunpack.c.h.b16 %v81
    %v360 = vunpack.c.l.b16 %v82
    %v361 = vunpack.c.h.b16 %v82
    %v362 = vunpack.c.l.b16 %v83
    %v363 = vunpack.c.h.b16 %v83
    %v364 = vpack.c.b16 %v356, %v348
    %v365 = vpack.c.b16 %v357, %v349
    %v366 = vpack.c.b16 %v358, %v350
    %v367 = vpack.c.b16 %v359, %v351
    %v368 = vpack.c.b16 %v360, %v352
    %v369 = vpack.c.b16 %v361, %v353
    %v370 = vpack.c.b16 %v362, %v354
    %v371 = vpack.c.b16 %v363, %v355
    %v636 = vunpack.c.l.b16 %v84
    %v637 = vunpack.c.h.b16 %v84
    %v638 = vunpack.c.l.b16 %v85
    %v639 = vunpack.c.h.b16 %v85
    %v640 = vunpack.c.l.b16 %v86
    %v641 = vunpack.c.h.b16 %v86
    %v642 = vunpack.c.l.b16 %v87
    %v643 = vunpack.c.h.b16 %v87
    %v644 = vunpack.c.l.b16 %v88
    %v645 = vunpack.c.h.b16 %v88
    %v646 = vunpack.c.l.b16 %v89
    %v647 = vunpack.c.h.b16 %v89
    %v648 = vunpack.c.l.b16 %v90
    %v649 = vunpack.c.h.b16 %v90
    %v650 = vunpack.c.l.b16 %v91
    %v651 = vunpack.c.h.b16 %v91
    %v652 = vunpack.c.l.b16 %v92
    %v653 = vunpack.c.h.b16 %v92
    %v654 = vunpack.c.l.b16 %v93
    %v655 = vunpack.c.h.b16 %v93
    %v656 = vunpack.c.l.b16 %v94
    %v657 = vunpack.c.h.b16 %v94
    %v658 = vunpack.c.l.b16 %v95
    %v659 = vunpack.c.h.b16 %v95
    %v660 = vunpack.c.l.b16 %v96
    %v661 = vunpack.c.h.b16 %v96
    %v662 = vunpack.c.l.b16 %v97
    %v663 = vunpack.c.h.b16 %v97
    %v664 = vunpack.c.l.b16 %v98
    %v665 = vunpack.c.h.b16 %v98
    %v666 = vunpack.c.l.b16 %v99
    %v667 = vunpack.c.h.b16 %v99
    %v668 = vunpack.c.l.b16 %v100
    %v669 = vunpack.c.h.b16 %v100
    %v670 = vunpack.c.l.b16 %v101
    %v671 = vunpack.c.h.b16 %v101
    %v672 = vunpack.c.l.b16 %v102
    %v673 = vunpack.c.h.b16 %v102
    %v674 = vunpack.c.l.b16 %v103
    %v675 = vunpack.c.h.b16 %v103
    %v676 = vunpack.c.l.b16 %v104
    %v677 = vunpack.c.h.b16 %v104
    %v678 = vunpack.c.l.b16 %v105
    %v679 = vunpack.c.h.b16 %v105
    %v680 = vunpack.c.l.b16 %v106
    %v681 = vunpack.c.h.b16 %v106
    %v682 = vunpack.c.l.b16 %v107
    %v683 = vunpack.c.h.b16 %v107
    %v684 = vunpack.c.l.b16 %v108
    %v685 = vunpack.c.h.b16 %v108
    %v686 = vunpack.c.l.b16 %v109
    %v687 = vunpack.c.h.b16 %v109
    %v688 = vunpack.c.l.b16 %v110
    %v689 = vunpack.c.h.b16 %v110
    %v690 = vunpack.c.l.b16 %v111
    %v691 = vunpack.c.h.b16 %v111
    %v692 = vunpack.c.l.b16 %v112
    %v693 = vunpack.c.h.b16 %v112
    %v694 = vunpack.c.l.b16 %v113
    %v695 = vunpack.c.h.b16 %v113
    %v696 = vunpack.c.l.b16 %v114
    %v697 = vunpack.c.h.b16 %v114
    %v698 = vunpack.c.l.b16 %v115
    %v699 = vunpack.c.h.b16 %v115
    %v700 = vunpack.c.l.b16 %v116
    %v701 = vunpack.c.h.b16 %v116
    %v702 = vunpack.c.l.b16 %v117
    %v703 = vunpack.c.h.b16 %v117
    %v704 = vunpack.c.l.b16 %v118
    %v705 = vunpack.c.h.b16 %v118
    %v706 = vunpack.c.l.b16 %v119
    %v707 = vunpack.c.h.b16 %v119
    %v708 = vunpack.c.l.b16 %v120
    %v709 = vunpack.c.h.b16 %v120
    %v710 = vunpack.c.l.b16 %v121
    %v711 = vunpack.c.h.b16 %v121
    %v712 = vunpack.c.l.b16 %v122
    %v713 = vunpack.c.h.b16 %v122
    %v714 = vunpack.c.l.b16 %v123
    %v715 = vunpack.c.h.b16 %v123
    %v716 = vunpack.c.l.b16 %v124
    %v717 = vunpack.c.h.b16 %v124
    %v718 = vunpack.c.l.b16 %v125
    %v719 = vunpack.c.h.b16 %v125
    %v720 = vunpack.c.l.b16 %v126
    %v721 = vunpack.c.h.b16 %v126
    %v722 = vunpack.c.l.b16 %v127
    %v723 = vunpack.c.h.b16 %v127
    %v724 = vunpack.c.l.b16 %v128
    %v725 = vunpack.c.h.b16 %v128
    %v726 = vunpack.c.l.b16 %v129
    %v727 = vunpack.c.h.b16 %v129
    %v728 = vunpack.c.l.b16 %v130
    %v729 = vunpack.c.h.b16 %v130
    %v730 = vunpack.c.l.b16 %v131
    %v731 = vunpack.c.h.b16 %v131
    %v732 = vunpack.c.l.b16 %v132
    %v733 = vunpack.c.h.b16 %v132
    %v734 = vunpack.c.l.b16 %v133
    %v735 = vunpack.c.h.b16 %v133
    %v736 = vunpack.c.l.b16 %v134
    %v737 = vunpack.c.h.b16 %v134
    %v738 = vunpack.c.l.b16 %v135
    %v739 = vunpack.c.h.b16 %v135
    %v740 = vunpack.c.l.b16 %v136
    %v741 = vunpack.c.h.b16 %v136
    %v742 = vunpack.c.l.b16 %v137
    %v743 = vunpack.c.h.b16 %v137
    %v744 = vunpack.c.l.b16 %v138
    %v745 = vunpack.c.h.b16 %v138
    %v746 = vunpack.c.l.b16 %v139
    %v747 = vunpack.c.h.b16 %v139
    %v748 = vunpack.c.l.b16 %v140
    %v749 = vunpack.c.h.b16 %v140
    %v750 = vunpack.c.l.b16 %v141
    %v751 = vunpack.c.h.b16 %v141
    %v752 = vunpack.c.l.b16 %v142
    %v753 = vunpack.c.h.b16 %v142
    %v754 = vunpack.c.l.b16 %v143
    %v755 = vunpack.c.h.b16 %v143
    %v756 = vunpack.c.l.b16 %v144
    %v757 = vunpack.c.h.b16 %v144
    %v758 = vunpack.c.l.b16 %v145
    %v759 = vunpack.c.h.b16 %v145
    %v760 = vunpack.c.l.b16 %v146
    %v761 = vunpack.c.h.b16 %v146
    %v762 = vunpack.c.l.b16 %v147
    %v763 = vunpack.c.h.b16 %v147
    %v764 = vunpack.c.l.b16 %v148
    %v765 = vunpack.c.h.b16 %v148
    %v766 = vunpack.c.l.b16 %v149
    %v767 = vunpack.c.h.b16 %v149
    %v768 = vunpack.c.l.b16 %v150
    %v769 = vunpack.c.h.b16 %v150
    %v770 = vunpack.c.l.b16 %v151
    %v771 = vunpack.c.h.b16 %v151
    %v772 = vunpack.c.l.b16 %v152
    %v773 = vunpack.c.h.b16 %v152
    %v774 = vunpack.c.l.b16 %v153
    %v775 = vunpack.c.h.b16 %v153
    %v776 = vunpack.c.l.b16 %v154
    %v777 = vunpack.c.h.b16 %v154
    %v778 = vunpack.c.l.b16 %v155
    %v779 = vunpack.c.h.b16 %v155
    %v780 = vunpack.c.l.b16 %v156
    %v781 = vunpack.c.h.b16 %v156
    %v782 = vunpack.c.l.b16 %v157
    %v783 = vunpack.c.h.b16 %v157
    %v784 = vunpack.c.l.b16 %v158
    %v785 = vunpack.c.h.b16 %v158
    %v786 = vunpack.c.l.b16 %v159
    %v787 = vunpack.c.h.b16 %v159
    %v788 = vunpack.c.l.b16 %v160
    %v789 = vunpack.c.h.b16 %v160
    %v790 = vunpack.c.l.b16 %v161
    %v791 = vunpack.c.h.b16 %v161
    %v792 = vunpack.c.l.b16 %v162
    %v793 = vunpack.c.h.b16 %v162
    %v794 = vunpack.c.l.b16 %v163
    %v795 = vunpack.c.h.b16 %v163
    %v796 = vunpack.c.l.b16 %v164
    %v797 = vunpack.c.h.b16 %v164
    %v798 = vunpack.c.l.b16 %v165
    %v799 = vunpack.c.h.b16 %v165
    %v800 = vunpack.c.l.b16 %v166
    %v801 = vunpack.c.h.b16 %v166
    %v802 = vunpack.c.l.b16 %v167
    %v803 = vunpack.c.h.b16 %v167
    %v804 = vunpack.c.l.b16 %v168
    %v805 = vunpack.c.h.b16 %v168
    %v806 = vunpack.c.l.b16 %v169
    %v807 = vunpack.c.h.b16 %v169
    %v808 = vunpack.c.l.b16 %v170
    %v809 = vunpack.c.h.b16 %v170
    %v810 = vunpack.c.l.b16 %v171
    %v811 = vunpack.c.h.b16 %v171
    %v812 = vunpack.c.l.b16 %v172
    %v813 = vunpack.c.h.b16 %v172
    %v814 = vunpack.c.l.b16 %v173
    %v815 = vunpack.c.h.b16 %v173
    %v816 = vunpack.c.l.b16 %v174
    %v817 = vunpack.c.h.b16 %v174
    %v818 = vunpack.c.l.b16 %v175
    %v819 = vunpack.c.h.b16 %v175
    %v820 = vunpack.c.l.b16 %v176
    %v821 = vunpack.c.h.b16 %v176
    %v822 = vunpack.c.l.b16 %v177
    %v823 = vunpack.c.h.b16 %v177
    %v824 = vunpack.c.l.b16 %v178
    %v825 = vunpack.c.h.b16 %v178
    %v826 = vunpack.c.l.b16 %v179
    %v827 = vunpack.c.h.b16 %v179
    %v828 = vunpack.c.l.b16 %v180
    %v829 = vunpack.c.h.b16 %v180
    %v830 = vunpack.c.l.b16 %v181
    %v831 = vunpack.c.h.b16 %v181
    %v832 = vunpack.c.l.b16 %v182
    %v833 = vunpack.c.h.b16 %v182
    %v834 = vunpack.c.l.b16 %v183
    %v835 = vunpack.c.h.b16 %v183
    %v836 = vunpack.c.l.b16 %v184
    %v837 = vunpack.c.h.b16 %v184
    %v838 = vunpack.c.l.b16 %v185
    %v839 = vunpack.c.h.b16 %v185
    %v840 = vunpack.c.l.b16 %v186
    %v841 = vunpack.c.h.b16 %v186
    %v842 = vunpack.c.l.b16 %v187
    %v843 = vunpack.c.h.b16 %v187
    %v844 = vunpack.c.l.b16 %v188
    %v845 = vunpack.c.h.b16 %v188
    %v846 = vunpack.c.l.b16 %v189
    %v847 = vunpack.c.h.b16 %v189
    %v848 = vunpack.c.l.b16 %v190
    %v849 = vunpack.c.h.b16 %v190
    %v850 = vunpack.c.l.b16 %v191
    %v851 = vunpack.c.h.b16 %v191
    %v852 = vunpack.c.l.b16 %v192
    %v853 = vunpack.c.h.b16 %v192
    %v854 = vunpack.c.l.b16 %v193
    %v855 = vunpack.c.h.b16 %v193
    %v856 = vunpack.c.l.b16 %v194
    %v857 = vunpack.c.h.b16 %v194
    %v858 = vunpack.c.l.b16 %v195
    %v859 = vunpack.c.h.b16 %v195
    %v860 = vunpack.c.l.b16 %v196
    %v861 = vunpack.c.h.b16 %v196
    %v862 = vunpack.c.l.b16 %v197
    %v863 = vunpack.c.h.b16 %v197
    %v864 = vunpack.c.l.b16 %v198
    %v865 = vunpack.c.h.b16 %v198
    %v866 = vunpack.c.l.b16 %v199
    %v867 = vunpack.c.h.b16 %v199
    %v868 = vunpack.c.l.b16 %v200
    %v869 = vunpack.c.h.b16 %v200
    %v870 = vunpack.c.l.b16 %v201
    %v871 = vunpack.c.h.b16 %v201
    %v872 = vunpack.c.l.b16 %v202
    %v873 = vunpack.c.h.b16 %v202
    %v874 = vunpack.c.l.b16 %v203
    %v875 = vunpack.c.h.b16 %v203
    %v876 = vunpack.c.l.b16 %v204
    %v877 = vunpack.c.h.b16 %v204
    %v878 = vunpack.c.l.b16 %v205
    %v879 = vunpack.c.h.b16 %v205
    %v880 = vunpack.c.l.b16 %v206
    %v881 = vunpack.c.h.b16 %v206
    %v882 = vunpack.c.l.b16 %v207
    %v883 = vunpack.c.h.b16 %v207
    %v884 = vunpack.c.l.b16 %v208
    %v885 = vunpack.c.h.b16 %v208
    %v886 = vunpack.c.l.b16 %v209
    %v887 = vunpack.c.h.b16 %v209
    %v888 = vunpack.c.l.b16 %v210
    %v889 = vunpack.c.h.b16 %v210
    %v890 = vunpack.c.l.b16 %v211
    %v891 = vunpack.c.h.b16 %v211
    %v892 = vunpack.c.l.b16 %v212
    %v893 = vunpack.c.h.b16 %v212
    %v894 = vunpack.c.l.b16 %v213
    %v895 = vunpack.c.h.b16 %v213
    %v896 = vunpack.c.l.b16 %v214
    %v897 = vunpack.c.h.b16 %v214
    %v898 = vunpack.c.l.b16 %v215
    %v899 = vunpack.c.h.b16 %v215
    %v900 = vunpack.c.l.b16 %v216
    %v901 = vunpack.c.h.b16 %v216
    %v902 = vunpack.c.l.b16 %v217
    %v903 = vunpack.c.h.b16 %v217
    %v904 = vunpack.c.l.b16 %v218
    %v905 = vunpack.c.h.b16 %v218
    %v906 = vunpack.c.l.b16 %v219
    %v907 = vunpack.c.h.b16 %v219
    %v908 = vunpack.c.l.b16 %v220
    %v909 = vunpack.c.h.b16 %v220
    %v910 = vunpack.c.l.b16 %v221
    %v911 = vunpack.c.h.b16 %v221
    %v912 = vunpack.c.l.b16 %v222
    %v913 = vunpack.c.h.b16 %v222
    %v914 = vunpack.c.l.b16 %v223
    %v915 = vunpack.c.h.b16 %v223
    %v916 = vunpack.c.l.b16 %v224
    %v917 = vunpack.c.h.b16 %v224
    %v918 = vunpack.c.l.b16 %v225
    %v919 = vunpack.c.h.b16 %v225
    %v920 = vunpack.c.l.b16 %v226
    %v921 = vunpack.c.h.b16 %v226
    %v922 = vunpack.c.l.b16 %v227
    %v923 = vunpack.c.h.b16 %v227
    %v924 = vunpack.c.l.b16 %v228
    %v925 = vunpack.c.h.b16 %v228
    %v926 = vunpack.c.l.b16 %v229
    %v927 = vunpack.c.h.b16 %v229
    %v928 = vunpack.c.l.b16 %v230
    %v929 = vunpack.c.h.b16 %v230
    %v930 = vunpack.c.l.b16 %v231
    %v931 = vunpack.c.h.b16 %v231
    %v932 = vunpack.c.l.b16 %v232
    %v933 = vunpack.c.h.b16 %v232
    %v934 = vunpack.c.l.b16 %v233
    %v935 = vunpack.c.h.b16 %v233
    %v936 = vunpack.c.l.b16 %v234
    %v937 = vunpack.c.h.b16 %v234
    %v938 = vunpack.c.l.b16 %v235
    %v939 = vunpack.c.h.b16 %v235
    %v940 = vunpack.c.l.b16 %v236
    %v941 = vunpack.c.h.b16 %v236
    %v942 = vunpack.c.l.b16 %v237
    %v943 = vunpack.c.h.b16 %v237
    %v944 = vunpack.c.l.b16 %v238
    %v945 = vunpack.c.h.b16 %v238
    %v946 = vunpack.c.l.b16 %v239
    %v947 = vunpack.c.h.b16 %v239
    %v948 = vunpack.c.l.b16 %v240
    %v949 = vunpack.c.h.b16 %v240
    %v950 = vunpack.c.l.b16 %v241
    %v951 = vunpack.c.h.b16 %v241
    %v952 = vunpack.c.l.b16 %v242
    %v953 = vunpack.c.h.b16 %v242
    %v954 = vunpack.c.l.b16 %v243
    %v955 = vunpack.c.h.b16 %v243
    %v956 = vunpack.c.l.b16 %v244
    %v957 = vunpack.c.h.b16 %v244
    %v958 = vunpack.c.l.b16 %v245
    %v959 = vunpack.c.h.b16 %v245
    %v960 = vunpack.c.l.b16 %v246
    %v961 = vunpack.c.h.b16 %v246
    %v962 = vunpack.c.l.b16 %v247
    %v963 = vunpack.c.h.b16 %v247
    %v964 = vunpack.c.l.b16 %v248
    %v965 = vunpack.c.h.b16 %v248
    %v966 = vunpack.c.l.b16 %v249
    %v967 = vunpack.c.h.b16 %v249
    %v968 = vunpack.c.l.b16 %v250
    %v969 = vunpack.c.h.b16 %v250
    %v970 = vunpack.c.l.b16 %v251
    %v971 = vunpack.c.h.b16 %v251
    %v972 = vunpack.c.l.b16 %v252
    %v973 = vunpack.c.h.b16 %v252
    %v974 = vunpack.c.l.b16 %v253
    %v975 = vunpack.c.h.b16 %v253
    %v976 = vunpack.c.l.b16 %v254
    %v977 = vunpack.c.h.b16 %v254
    %v978 = vunpack.c.l.b16 %v255
    %v979 = vunpack.c.h.b16 %v255
    %v980 = vunpack.c.l.b16 %v256
    %v981 = vunpack.c.h.b16 %v256
    %v982 = vunpack.c.l.b16 %v257
    %v983 = vunpack.c.h.b16 %v257
    %v984 = vunpack.c.l.b16 %v258
    %v985 = vunpack.c.h.b16 %v258
    %v986 = vunpack.c.l.b16 %v259
    %v987 = vunpack.c.h.b16 %v259
    %v988 = vunpack.c.l.b16 %v260
    %v989 = vunpack.c.h.b16 %v260
    %v990 = vunpack.c.l.b16 %v261
    %v991 = vunpack.c.h.b16 %v261
    %v992 = vunpack.c.l.b16 %v262
    %v993 = vunpack.c.h.b16 %v262
    %v994 = vunpack.c.l.b16 %v263
    %v995 = vunpack.c.h.b16 %v263
    %v996 = vunpack.c.l.b16 %v264
    %v997 = vunpack.c.h.b16 %v264
    %v998 = vunpack.c.l.b16 %v265
    %v999 = vunpack.c.h.b16 %v265
    %v1000 = vunpack.c.l.b16 %v266
    %v1001 = vunpack.c.h.b16 %v266
    %v1002 = vunpack.c.l.b16 %v267
    %v1003 = vunpack.c.h.b16 %v267
    %v1004 = vunpack.c.l.b16 %v268
    %v1005 = vunpack.c.h.b16 %v268
    %v1006 = vunpack.c.l.b16 %v269
    %v1007 = vunpack.c.h.b16 %v269
    %v1008 = vunpack.c.l.b16 %v270
    %v1009 = vunpack.c.h.b16 %v270
    %v1010 = vunpack.c.l.b16 %v271
    %v1011 = vunpack.c.h.b16 %v271
    %v1012 = vunpack.c.l.b16 %v272
    %v1013 = vunpack.c.h.b16 %v272
    %v1014 = vunpack.c.l.b16 %v273
    %v1015 = vunpack.c.h.b16 %v273
    %v1016 = vunpack.c.l.b16 %v274
    %v1017 = vunpack.c.h.b16 %v274
    %v1018 = vunpack.c.l.b16 %v275
    %v1019 = vunpack.c.h.b16 %v275
    %v1020 = vunpack.c.l.b16 %v276
    %v1021 = vunpack.c.h.b16 %v276
    %v1022 = vunpack.c.l.b16 %v277
    %v1023 = vunpack.c.h.b16 %v277
    %v1024 = vunpack.c.l.b16 %v278
    %v1025 = vunpack.c.h.b16 %v278
    %v1026 = vunpack.c.l.b16 %v279
    %v1027 = vunpack.c.h.b16 %v279
    %v1028 = vunpack.c.l.b16 %v280
    %v1029 = vunpack.c.h.b16 %v280
    %v1030 = vunpack.c.l.b16 %v281
    %v1031 = vunpack.c.h.b16 %v281
    %v1032 = vunpack.c.l.b16 %v282
    %v1033 = vunpack.c.h.b16 %v282
    %v1034 = vunpack.c.l.b16 %v283
    %v1035 = vunpack.c.h.b16 %v283
    %v1036 = vunpack.c.l.b16 %v284
    %v1037 = vunpack.c.h.b16 %v284
    %v1038 = vunpack.c.l.b16 %v285
    %v1039 = vunpack.c.h.b16 %v285
    %v1040 = vunpack.c.l.b16 %v286
    %v1041 = vunpack.c.h.b16 %v286
    %v1042 = vunpack.c.l.b16 %v287
    %v1043 = vunpack.c.h.b16 %v287
    %v1044 = vunpack.c.l.b16 %v288
    %v1045 = vunpack.c.h.b16 %v288
    %v1046 = vunpack.c.l.b16 %v289
    %v1047 = vunpack.c.h.b16 %v289
    %v1048 = vunpack.c.l.b16 %v290
    %v1049 = vunpack.c.h.b16 %v290
    %v1050 = vunpack.c.l.b16 %v291
    %v1051 = vunpack.c.h.b16 %v291
    %v1052 = vunpack.c.l.b16 %v292
    %v1053 = vunpack.c.h.b16 %v292
    %v1054 = vunpack.c.l.b16 %v293
    %v1055 = vunpack.c.h.b16 %v293
    %v1056 = vunpack.c.l.b16 %v294
    %v1057 = vunpack.c.h.b16 %v294
    %v1058 = vunpack.c.l.b16 %v295
    %v1059 = vunpack.c.h.b16 %v295
    %v1060 = vunpack.c.l.b16 %v296
    %v1061 = vunpack.c.h.b16 %v296
    %v1062 = vunpack.c.l.b16 %v297
    %v1063 = vunpack.c.h.b16 %v297
    %v1064 = vunpack.c.l.b16 %v298
    %v1065 = vunpack.c.h.b16 %v298
    %v1066 = vunpack.c.l.b16 %v299
    %v1067 = vunpack.c.h.b16 %v299
    %v1068 = vunpack.c.l.b16 %v300
    %v1069 = vunpack.c.h.b16 %v300
    %v1070 = vunpack.c.l.b16 %v301
    %v1071 = vunpack.c.h.b16 %v301
    %v1072 = vunpack.c.l.b16 %v302
    %v1073 = vunpack.c.h.b16 %v302
    %v1074 = vunpack.c.l.b16 %v303
    %v1075 = vunpack.c.h.b16 %v303
    %v1076 = vunpack.c.l.b16 %v304
    %v1077 = vunpack.c.h.b16 %v304
    %v1078 = vunpack.c.l.b16 %v305
    %v1079 = vunpack.c.h.b16 %v305
    %v1080 = vunpack.c.l.b16 %v306
    %v1081 = vunpack.c.h.b16 %v306
    %v1082 = vunpack.c.l.b16 %v307
    %v1083 = vunpack.c.h.b16 %v307
    %v1084 = vunpack.c.l.b16 %v308
    %v1085 = vunpack.c.h.b16 %v308
    %v1086 = vunpack.c.l.b16 %v309
    %v1087 = vunpack.c.h.b16 %v309
    %v1088 = vunpack.c.l.b16 %v310
    %v1089 = vunpack.c.h.b16 %v310
    %v1090 = vunpack.c.l.b16 %v311
    %v1091 = vunpack.c.h.b16 %v311
    %v1092 = vunpack.c.l.b16 %v312
    %v1093 = vunpack.c.h.b16 %v312
    %v1094 = vunpack.c.l.b16 %v313
    %v1095 = vunpack.c.h.b16 %v313
    %v1096 = vunpack.c.l.b16 %v314
    %v1097 = vunpack.c.h.b16 %v314
    %v1098 = vunpack.c.l.b16 %v315
    %v1099 = vunpack.c.h.b16 %v315
    %v1100 = vunpack.c.l.b16 %v316
    %v1101 = vunpack.c.h.b16 %v316
    %v1102 = vunpack.c.l.b16 %v317
    %v1103 = vunpack.c.h.b16 %v317
    %v1104 = vunpack.c.l.b16 %v318
    %v1105 = vunpack.c.h.b16 %v318
    %v1106 = vunpack.c.l.b16 %v319
    %v1107 = vunpack.c.h.b16 %v319
    %v1108 = vunpack.c.l.b16 %v320
    %v1109 = vunpack.c.h.b16 %v320
    %v1110 = vunpack.c.l.b16 %v321
    %v1111 = vunpack.c.h.b16 %v321
    %v1112 = vunpack.c.l.b16 %v322
    %v1113 = vunpack.c.h.b16 %v322
    %v1114 = vunpack.c.l.b16 %v323
    %v1115 = vunpack.c.h.b16 %v323
    %v1116 = vunpack.c.l.b16 %v324
    %v1117 = vunpack.c.h.b16 %v324
    %v1118 = vunpack.c.l.b16 %v325
    %v1119 = vunpack.c.h.b16 %v325
    %v1120 = vunpack.c.l.b16 %v326
    %v1121 = vunpack.c.h.b16 %v326
    %v1122 = vunpack.c.l.b16 %v327
    %v1123 = vunpack.c.h.b16 %v327
    %v1124 = vunpack.c.l.b16 %v328
    %v1125 = vunpack.c.h.b16 %v328
    %v1126 = vunpack.c.l.b16 %v329
    %v1127 = vunpack.c.h.b16 %v329
    %v1128 = vunpack.c.l.b16 %v330
    %v1129 = vunpack.c.h.b16 %v330
    %v1130 = vunpack.c.l.b16 %v331
    %v1131 = vunpack.c.h.b16 %v331
    %v1132 = vunpack.c.l.b16 %v332
    %v1133 = vunpack.c.h.b16 %v332
    %v1134 = vunpack.c.l.b16 %v333
    %v1135 = vunpack.c.h.b16 %v333
    %v1136 = vunpack.c.l.b16 %v334
    %v1137 = vunpack.c.h.b16 %v334
    %v1138 = vunpack.c.l.b16 %v335
    %v1139 = vunpack.c.h.b16 %v335
    %v1140 = vunpack.c.l.b16 %v336
    %v1141 = vunpack.c.h.b16 %v336
    %v1142 = vunpack.c.l.b16 %v337
    %v1143 = vunpack.c.h.b16 %v337
    %v1144 = vunpack.c.l.b16 %v338
    %v1145 = vunpack.c.h.b16 %v338
    %v1146 = vunpack.c.l.b16 %v339
    %v1147 = vunpack.c.h.b16 %v339
    %v1148 = vpack.c.b16 %v640, %v636
    %v1149 = vpack.c.b16 %v641, %v637
    %v1150 = vpack.c.b16 %v642, %v638
    %v1151 = vpack.c.b16 %v643, %v639
    %v1152 = vpack.c.b16 %v648, %v644
    %v1153 = vpack.c.b16 %v649, %v645
    %v1154 = vpack.c.b16 %v650, %v646
    %v1155 = vpack.c.b16 %v651, %v647
    %v1156 = vpack.c.b16 %v656, %v652
    %v1157 = vpack.c.b16 %v657, %v653
    %v1158 = vpack.c.b16 %v658, %v654
    %v1159 = vpack.c.b16 %v659, %v655
    %v1160 = vpack.c.b16 %v664, %v660
    %v1161 = vpack.c.b16 %v665, %v661
    %v1162 = vpack.c.b16 %v666, %v662
    %v1163 = vpack.c.b16 %v667, %v663
    %v1164 = vpack.c.b16 %v672, %v668
    %v1165 = vpack.c.b16 %v673, %v669
    %v1166 = vpack.c.b16 %v674, %v670
    %v1167 = vpack.c.b16 %v675, %v671
    %v1168 = vpack.c.b16 %v680, %v676
    %v1169 = vpack.c.b16 %v681, %v677
    %v1170 = vpack.c.b16 %v682, %v678
    %v1171 = vpack.c.b16 %v683, %v679
    %v1172 = vpack.c.b16 %v688, %v684
    %v1173 = vpack.c.b16 %v689, %v685
    %v1174 = vpack.c.b16 %v690, %v686
    %v1175 = vpack.c.b16 %v691, %v687
    %v1176 = vpack.c.b16 %v696, %v692
    %v1177 = vpack.c.b16 %v697, %v693
    %v1178 = vpack.c.b16 %v698, %v694
    %v1179 = vpack.c.b16 %v699, %v695
    %v1180 = vpack.c.b16 %v704, %v700
    %v1181 = vpack.c.b16 %v705, %v701
    %v1182 = vpack.c.b16 %v706, %v702
    %v1183 = vpack.c.b16 %v707, %v703
    %v1184 = vpack.c.b16 %v712, %v708
    %v1185 = vpack.c.b16 %v713, %v709
    %v1186 = vpack.c.b16 %v714, %v710
    %v1187 = vpack.c.b16 %v715, %v711
    %v1188 = vpack.c.b16 %v720, %v716
    %v1189 = vpack.c.b16 %v721, %v717
    %v1190 = vpack.c.b16 %v722, %v718
    %v1191 = vpack.c.b16 %v723, %v719
    %v1192 = vpack.c.b16 %v728, %v724
    %v1193 = vpack.c.b16 %v729, %v725
    %v1194 = vpack.c.b16 %v730, %v726
    %v1195 = vpack.c.b16 %v731, %v727
    %v1196 = vpack.c.b16 %v736, %v732
    %v1197 = vpack.c.b16 %v737, %v733
    %v1198 = vpack.c.b16 %v738, %v734
    %v1199 = vpack.c.b16 %v739, %v735
    %v1200 = vpack.c.b16 %v744, %v740
    %v1201 = vpack.c.b16 %v745, %v741
    %v1202 = vpack.c.b16 %v746, %v742
    %v1203 = vpack.c.b16 %v747, %v743
    %v1204 = vpack.c.b16 %v752, %v748
    %v1205 = vpack.c.b16 %v753, %v749
    %v1206 = vpack.c.b16 %v754, %v750
    %v1207 = vpack.c.b16 %v755, %v751
    %v1208 = vpack.c.b16 %v760, %v756
    %v1209 = vpack.c.b16 %v761, %v757
    %v1210 = vpack.c.b16 %v762, %v758
    %v1211 = vpack.c.b16 %v763, %v759
    %v1212 = vpack.c.b16 %v768, %v764
    %v1213 = vpack.c.b16 %v769, %v765
    %v1214 = vpack.c.b16 %v770, %v766
    %v1215 = vpack.c.b16 %v771, %v767
    %v1216 = vpack.c.b16 %v776, %v772
    %v1217 = vpack.c.b16 %v777, %v773
    %v1218 = vpack.c.b16 %v778, %v774
    %v1219 = vpack.c.b16 %v779, %v775
    %v1220 = vpack.c.b16 %v784, %v780
    %v1221 = vpack.c.b16 %v785, %v781
    %v1222 = vpack.c.b16 %v786, %v782
    %v1223 = vpack.c.b16 %v787, %v783
    %v1224 = vpack.c.b16 %v792, %v788
    %v1225 = vpack.c.b16 %v793, %v789
    %v1226 = vpack.c.b16 %v794, %v790
    %v1227 = vpack.c.b16 %v795, %v791
    %v1228 = vpack.c.b16 %v800, %v796
    %v1229 = vpack.c.b16 %v801, %v797
    %v1230 = vpack.c.b16 %v802, %v798
    %v1231 = vpack.c.b16 %v803, %v799
    %v1232 = vpack.c.b16 %v808, %v804
    %v1233 = vpack.c.b16 %v809, %v805
    %v1234 = vpack.c.b16 %v810, %v806
    %v1235 = vpack.c.b16 %v811, %v807
    %v1236 = vpack.c.b16 %v816, %v812
    %v1237 = vpack.c.b16 %v817, %v813
    %v1238 = vpack.c.b16 %v818, %v814
    %v1239 = vpack.c.b16 %v819, %v815
    %v1240 = vpack.c.b16 %v824, %v820
    %v1241 = vpack.c.b16 %v825, %v821
    %v1242 = vpack.c.b16 %v826, %v822
    %v1243 = vpack.c.b16 %v827, %v823
    %v1244 = vpack.c.b16 %v832, %v828
    %v1245 = vpack.c.b16 %v833, %v829
    %v1246 = vpack.c.b16 %v834, %v830
    %v1247 = vpack.c.b16 %v835, %v831
    %v1248 = vpack.c.b16 %v840, %v836
    %v1249 = vpack.c.b16 %v841, %v837
    %v1250 = vpack.c.b16 %v842, %v838
    %v1251 = vpack.c.b16 %v843, %v839
    %v1252 = vpack.c.b16 %v848, %v844
    %v1253 = vpack.c.b16 %v849, %v845
    %v1254 = vpack.c.b16 %v850, %v846
    %v1255 = vpack.c.b16 %v851, %v847
    %v1256 = vpack.c.b16 %v856, %v852
    %v1257 = vpack.c.b16 %v857, %v853
    %v1258 = vpack.c.b16 %v858, %v854
    %v1259 = vpack.c.b16 %v859, %v855
    %v1260 = vpack.c.b16 %v864, %v860
    %v1261 = vpack.c.b16 %v865, %v861
    %v1262 = vpack.c.b16 %v866, %v862
    %v1263 = vpack.c.b16 %v867, %v863
    %v1264 = vpack.c.b16 %v872, %v868
    %v1265 = vpack.c.b16 %v873, %v869
    %v1266 = vpack.c.b16 %v874, %v870
    %v1267 = vpack.c.b16 %v875, %v871
    %v1268 = vpack.c.b16 %v880, %v876
    %v1269 = vpack.c.b16 %v881, %v877
    %v1270 = vpack.c.b16 %v882, %v878
    %v1271 = vpack.c.b16 %v883, %v879
    %v1272 = vpack.c.b16 %v888, %v884
    %v1273 = vpack.c.b16 %v889, %v885
    %v1274 = vpack.c.b16 %v890, %v886
    %v1275 = vpack.c.b16 %v891, %v887
    %v1276 = vpack.c.b16 %v896, %v892
    %v1277 = vpack.c.b16 %v897, %v893
    %v1278 = vpack.c.b16 %v898, %v894
    %v1279 = vpack.c.b16 %v899, %v895
    %v1280 = vpack.c.b16 %v904, %v900
    %v1281 = vpack.c.b16 %v905, %v901
    %v1282 = vpack.c.b16 %v906, %v902
    %v1283 = vpack.c.b16 %v907, %v903
    %v1284 = vpack.c.b16 %v912, %v908
    %v1285 = vpack.c.b16 %v913, %v909
    %v1286 = vpack.c.b16 %v914, %v910
    %v1287 = vpack.c.b16 %v915, %v911
    %v1288 = vpack.c.b16 %v920, %v916
    %v1289 = vpack.c.b16 %v921, %v917
    %v1290 = vpack.c.b16 %v922, %v918
    %v1291 = vpack.c.b16 %v923, %v919
    %v1292 = vpack.c.b16 %v928, %v924
    %v1293 = vpack.c.b16 %v929, %v925
    %v1294 = vpack.c.b16 %v930, %v926
    %v1295 = vpack.c.b16 %v931, %v927
    %v1296 = vpack.c.b16 %v936, %v932
    %v1297 = vpack.c.b16 %v937, %v933
    %v1298 = vpack.c.b16 %v938, %v934
    %v1299 = vpack.c.b16 %v939, %v935
    %v1300 = vpack.c.b16 %v944, %v940
    %v1301 = vpack.c.b16 %v945, %v941
    %v1302 = vpack.c.b16 %v946, %v942
    %v1303 = vpack.c.b16 %v947, %v943
    %v1304 = vpack.c.b16 %v952, %v948
    %v1305 = vpack.c.b16 %v953, %v949
    %v1306 = vpack.c.b16 %v954, %v950
    %v1307 = vpack.c.b16 %v955, %v951
    %v1308 = vpack.c.b16 %v960, %v956
    %v1309 = vpack.c.b16 %v961, %v957
    %v1310 = vpack.c.b16 %v962, %v958
    %v1311 = vpack.c.b16 %v963, %v959
    %v1312 = vpack.c.b16 %v968, %v964
    %v1313 = vpack.c.b16 %v969, %v965
    %v1314 = vpack.c.b16 %v970, %v966
    %v1315 = vpack.c.b16 %v971, %v967
    %v1316 = vpack.c.b16 %v976, %v972
    %v1317 = vpack.c.b16 %v977, %v973
    %v1318 = vpack.c.b16 %v978, %v974
    %v1319 = vpack.c.b16 %v979, %v975
    %v1320 = vpack.c.b16 %v984, %v980
    %v1321 = vpack.c.b16 %v985, %v981
    %v1322 = vpack.c.b16 %v986, %v982
    %v1323 = vpack.c.b16 %v987, %v983
    %v1324 = vpack.c.b16 %v992, %v988
    %v1325 = vpack.c.b16 %v993, %v989
    %v1326 = vpack.c.b16 %v994, %v990
    %v1327 = vpack.c.b16 %v995, %v991
    %v1328 = vpack.c.b16 %v1000, %v996
    %v1329 = vpack.c.b16 %v1001, %v997
    %v1330 = vpack.c.b16 %v1002, %v998
    %v1331 = vpack.c.b16 %v1003, %v999
    %v1332 = vpack.c.b16 %v1008, %v1004
    %v1333 = vpack.c.b16 %v1009, %v1005
    %v1334 = vpack.c.b16 %v1010, %v1006
    %v1335 = vpack.c.b16 %v1011, %v1007
    %v1336 = vpack.c.b16 %v1016, %v1012
    %v1337 = vpack.c.b16 %v1017, %v1013
    %v1338 = vpack.c.b16 %v1018, %v1014
    %v1339 = vpack.c.b16 %v1019, %v1015
    %v1340 = vpack.c.b16 %v1024, %v1020
    %v1341 = vpack.c.b16 %v1025, %v1021
    %v1342 = vpack.c.b16 %v1026, %v1022
    %v1343 = vpack.c.b16 %v1027, %v1023
    %v1344 = vpack.c.b16 %v1032, %v1028
    %v1345 = vpack.c.b16 %v1033, %v1029
    %v1346 = vpack.c.b16 %v1034, %v1030
    %v1347 = vpack.c.b16 %v1035, %v1031
    %v1348 = vpack.c.b16 %v1040, %v1036
    %v1349 = vpack.c.b16 %v1041, %v1037
    %v1350 = vpack.c.b16 %v1042, %v1038
    %v1351 = vpack.c.b16 %v1043, %v1039
    %v1352 = vpack.c.b16 %v1048, %v1044
    %v1353 = vpack.c.b16 %v1049, %v1045
    %v1354 = vpack.c.b16 %v1050, %v1046
    %v1355 = vpack.c.b16 %v1051, %v1047
    %v1356 = vpack.c.b16 %v1056, %v1052
    %v1357 = vpack.c.b16 %v1057, %v1053
    %v1358 = vpack.c.b16 %v1058, %v1054
    %v1359 = vpack.c.b16 %v1059, %v1055
    %v1360 = vpack.c.b16 %v1064, %v1060
    %v1361 = vpack.c.b16 %v1065, %v1061
    %v1362 = vpack.c.b16 %v1066, %v1062
    %v1363 = vpack.c.b16 %v1067, %v1063
    %v1364 = vpack.c.b16 %v1072, %v1068
    %v1365 = vpack.c.b16 %v1073, %v1069
    %v1366 = vpack.c.b16 %v1074, %v1070
    %v1367 = vpack.c.b16 %v1075, %v1071
    %v1368 = vpack.c.b16 %v1080, %v1076
    %v1369 = vpack.c.b16 %v1081, %v1077
    %v1370 = vpack.c.b16 %v1082, %v1078
    %v1371 = vpack.c.b16 %v1083, %v1079
    %v1372 = vpack.c.b16 %v1088, %v1084
    %v1373 = vpack.c.b16 %v1089, %v1085
    %v1374 = vpack.c.b16 %v1090, %v1086
    %v1375 = vpack.c.b16 %v1091, %v1087
    %v1376 = vpack.c.b16 %v1096, %v1092
    %v1377 = vpack.c.b16 %v1097, %v1093
    %v1378 = vpack.c.b16 %v1098, %v1094
    %v1379 = vpack.c.b16 %v1099, %v1095
    %v1380 = vpack.c.b16 %v1104, %v1100
    %v1381 = vpack.c.b16 %v1105, %v1101
    %v1382 = vpack.c.b16 %v1106, %v1102
    %v1383 = vpack.c.b16 %v1107, %v1103
    %v1384 = vpack.c.b16 %v1112, %v1108
    %v1385 = vpack.c.b16 %v1113, %v1109
    %v1386 = vpack.c.b16 %v1114, %v1110
    %v1387 = vpack.c.b16 %v1115, %v1111
    %v1388 = vpack.c.b16 %v1120, %v1116
    %v1389 = vpack.c.b16 %v1121, %v1117
    %v1390 = vpack.c.b16 %v1122, %v1118
    %v1391 = vpack.c.b16 %v1123, %v1119
    %v1392 = vpack.c.b16 %v1128, %v1124
    %v1393 = vpack.c.b16 %v1129, %v1125
    %v1394 = vpack.c.b16 %v1130, %v1126
    %v1395 = vpack.c.b16 %v1131, %v1127
    %v1396 = vpack.c.b16 %v1136, %v1132
    %v1397 = vpack.c.b16 %v1137, %v1133
    %v1398 = vpack.c.b16 %v1138, %v1134
    %v1399 = vpack.c.b16 %v1139, %v1135
    %v1400 = vpack.c.b16 %v1144, %v1140
    %v1401 = vpack.c.b16 %v1145, %v1141
    %v1402 = vpack.c.b16 %v1146, %v1142
    %v1403 = vpack.c.b16 %v1147, %v1143
    %1660 = vmatprep.subr.bf16.mxu0 %v1149
    %1661 = vmatpush1.bf16.msra.mxu0 %v1148
    %1662 = vmatprep.subr.bf16.mxu0 %v1153
    %1663 = vmatpush1.bf16.msra.mxu0 %v1152
    %1664 = vmatprep.subr.bf16.mxu0 %v1157
    %1665 = vmatpush1.bf16.msra.mxu0 %v1156
    %1666 = vmatprep.subr.bf16.mxu0 %v1161
    %1667 = vmatpush1.bf16.msra.mxu0 %v1160
    %1668 = vmatprep.subr.bf16.mxu0 %v1165
    %1669 = vmatpush1.bf16.msra.mxu0 %v1164
    %1670 = vmatprep.subr.bf16.mxu0 %v1169
    %1671 = vmatpush1.bf16.msra.mxu0 %v1168
    %1672 = vmatprep.subr.bf16.mxu0 %v1173
    %1673 = vmatpush1.bf16.msra.mxu0 %v1172
    %1674 = vmatprep.subr.bf16.mxu0 %v1177
    %1675 = vmatpush1.bf16.msra.mxu0 %v1176
    %1676 = vmatprep.subr.bf16.mxu0 %v1181
    %1677 = vmatpush1.bf16.msra.mxu0 %v1180
    %1678 = vmatprep.subr.bf16.mxu0 %v1185
    %1679 = vmatpush1.bf16.msra.mxu0 %v1184
    %1680 = vmatprep.subr.bf16.mxu0 %v1189
    %1681 = vmatpush1.bf16.msra.mxu0 %v1188
    %1682 = vmatprep.subr.bf16.mxu0 %v1193
    %1683 = vmatpush1.bf16.msra.mxu0 %v1192
    %1684 = vmatprep.subr.bf16.mxu0 %v1197
    %1685 = vmatpush1.bf16.msra.mxu0 %v1196
    %1686 = vmatprep.subr.bf16.mxu0 %v1201
    %1687 = vmatpush1.bf16.msra.mxu0 %v1200
    %1688 = vmatprep.subr.bf16.mxu0 %v1205
    %1689 = vmatpush1.bf16.msra.mxu0 %v1204
    %1690 = vmatprep.subr.bf16.mxu0 %v1209
    %1691 = vmatpush1.bf16.msra.mxu0 %v1208
    %1692 = vmatprep.mubr.bf16.mxu0 %v365
    %1693 = vmatmul.mubr.bf16.gmra.mrb[0].mxu0 %v364
    %v1694 = vpop.f32.mrb[0].mxu0
    %v1695 = vadd.f32 0.0, %v1694
    %v1696 = vpop.f32.mrb[0].mxu0
    %v1697 = vadd.f32 0.0, %v1696
    %v1698 = vpop.f32.mrb[0].mxu0
    %v1699 = vadd.f32 0.0, %v1698
    %v1700 = vpop.f32.mrb[0].mxu0
    %v1701 = vadd.f32 0.0, %v1700
    %1702 = vdwg.mxu0
    %1703 = vmatprep.subr.bf16.mxu0 %v1213
    %1704 = vmatpush1.bf16.msra.mxu0 %v1212
    %1705 = vmatprep.subr.bf16.mxu0 %v1217
    %1706 = vmatpush1.bf16.msra.mxu0 %v1216
    %1707 = vmatprep.subr.bf16.mxu0 %v1221
    %1708 = vmatpush1.bf16.msra.mxu0 %v1220
    %1709 = vmatprep.subr.bf16.mxu0 %v1225
    %1710 = vmatpush1.bf16.msra.mxu0 %v1224
    %1711 = vmatprep.subr.bf16.mxu0 %v1229
    %1712 = vmatpush1.bf16.msra.mxu0 %v1228
    %1713 = vmatprep.subr.bf16.mxu0 %v1233
    %1714 = vmatpush1.bf16.msra.mxu0 %v1232
    %1715 = vmatprep.subr.bf16.mxu0 %v1237
    %1716 = vmatpush1.bf16.msra.mxu0 %v1236
    %1717 = vmatprep.subr.bf16.mxu0 %v1241
    %1718 = vmatpush1.bf16.msra.mxu0 %v1240
    %1719 = vmatprep.subr.bf16.mxu0 %v1245
    %1720 = vmatpush1.bf16.msra.mxu0 %v1244
    %1721 = vmatprep.subr.bf16.mxu0 %v1249
    %1722 = vmatpush1.bf16.msra.mxu0 %v1248
    %1723 = vmatprep.subr.bf16.mxu0 %v1253
    %1724 = vmatpush1.bf16.msra.mxu0 %v1252
    %1725 = vmatprep.subr.bf16.mxu0 %v1257
    %1726 = vmatpush1.bf16.msra.mxu0 %v1256
    %1727 = vmatprep.subr.bf16.mxu0 %v1261
    %1728 = vmatpush1.bf16.msra.mxu0 %v1260
    %1729 = vmatprep.subr.bf16.mxu0 %v1265
    %1730 = vmatpush1.bf16.msra.mxu0 %v1264
    %1731 = vmatprep.subr.bf16.mxu0 %v1269
    %1732 = vmatpush1.bf16.msra.mxu0 %v1268
    %1733 = vmatprep.subr.bf16.mxu0 %v1273
    %1734 = vmatpush1.bf16.msra.mxu0 %v1272
    %1735 = vmatprep.mubr.bf16.mxu0 %v367
    %1736 = vmatmul.mubr.bf16.gmra.mrb[0].mxu0 %v366
    %v1737 = vpop.f32.mrb[0].mxu0
    %v1738 = vadd.f32 %v1695, %v1737
    %v1739 = vpop.f32.mrb[0].mxu0
    %v1740 = vadd.f32 %v1697, %v1739
    %v1741 = vpop.f32.mrb[0].mxu0
    %v1742 = vadd.f32 %v1699, %v1741
    %v1743 = vpop.f32.mrb[0].mxu0
    %v1744 = vadd.f32 %v1701, %v1743
    %1745 = vdwg.mxu0
    %1746 = vmatprep.subr.bf16.mxu0 %v1277
    %1747 = vmatpush1.bf16.msra.mxu0 %v1276
    %1748 = vmatprep.subr.bf16.mxu0 %v1281
    %1749 = vmatpush1.bf16.msra.mxu0 %v1280
    %1750 = vmatprep.subr.bf16.mxu0 %v1285
    %1751 = vmatpush1.bf16.msra.mxu0 %v1284
    %1752 = vmatprep.subr.bf16.mxu0 %v1289
    %1753 = vmatpush1.bf16.msra.mxu0 %v1288
    %1754 = vmatprep.subr.bf16.mxu0 %v1293
    %1755 = vmatpush1.bf16.msra.mxu0 %v1292
    %1756 = vmatprep.subr.bf16.mxu0 %v1297
    %1757 = vmatpush1.bf16.msra.mxu0 %v1296
    %1758 = vmatprep.subr.bf16.mxu0 %v1301
    %1759 = vmatpush1.bf16.msra.mxu0 %v1300
    %1760 = vmatprep.subr.bf16.mxu0 %v1305
    %1761 = vmatpush1.bf16.msra.mxu0 %v1304
    %1762 = vmatprep.subr.bf16.mxu0 %v1309
    %1763 = vmatpush1.bf16.msra.mxu0 %v1308
    %1764 = vmatprep.subr.bf16.mxu0 %v1313
    %1765 = vmatpush1.bf16.msra.mxu0 %v1312
    %1766 = vmatprep.subr.bf16.mxu0 %v1317
    %1767 = vmatpush1.bf16.msra.mxu0 %v1316
    %1768 = vmatprep.subr.bf16.mxu0 %v1321
    %1769 = vmatpush1.bf16.msra.mxu0 %v1320
    %1770 = vmatprep.subr.bf16.mxu0 %v1325
    %1771 = vmatpush1.bf16.msra.mxu0 %v1324
    %1772 = vmatprep.subr.bf16.mxu0 %v1329
    %1773 = vmatpush1.bf16.msra.mxu0 %v1328
    %1774 = vmatprep.subr.bf16.mxu0 %v1333
    %1775 = vmatpush1.bf16.msra.mxu0 %v1332
    %1776 = vmatprep.subr.bf16.mxu0 %v1337
    %1777 = vmatpush1.bf16.msra.mxu0 %v1336
    %1778 = vmatprep.mubr.bf16.mxu0 %v369
    %1779 = vmatmul.mubr.bf16.gmra.mrb[0].mxu0 %v368
    %v1780 = vpop.f32.mrb[0].mxu0
    %v1781 = vadd.f32 %v1738, %v1780
    %v1782 = vpop.f32.mrb[0].mxu0
    %v1783 = vadd.f32 %v1740, %v1782
    %v1784 = vpop.f32.mrb[0].mxu0
    %v1785 = vadd.f32 %v1742, %v1784
    %v1786 = vpop.f32.mrb[0].mxu0
    %v1787 = vadd.f32 %v1744, %v1786
    %1788 = vdwg.mxu0
    %1789 = vmatprep.subr.bf16.mxu0 %v1341
    %1790 = vmatpush1.bf16.msra.mxu0 %v1340
    %1791 = vmatprep.subr.bf16.mxu0 %v1345
    %1792 = vmatpush1.bf16.msra.mxu0 %v1344
    %1793 = vmatprep.subr.bf16.mxu0 %v1349
    %1794 = vmatpush1.bf16.msra.mxu0 %v1348
    %1795 = vmatprep.subr.bf16.mxu0 %v1353
    %1796 = vmatpush1.bf16.msra.mxu0 %v1352
    %1797 = vmatprep.subr.bf16.mxu0 %v1357
    %1798 = vmatpush1.bf16.msra.mxu0 %v1356
    %1799 = vmatprep.subr.bf16.mxu0 %v1361
    %1800 = vmatpush1.bf16.msra.mxu0 %v1360
    %1801 = vmatprep.subr.bf16.mxu0 %v1365
    %1802 = vmatpush1.bf16.msra.mxu0 %v1364
    %1803 = vmatprep.subr.bf16.mxu0 %v1369
    %1804 = vmatpush1.bf16.msra.mxu0 %v1368
    %1805 = vmatprep.subr.bf16.mxu0 %v1373
    %1806 = vmatpush1.bf16.msra.mxu0 %v1372
    %1807 = vmatprep.subr.bf16.mxu0 %v1377
    %1808 = vmatpush1.bf16.msra.mxu0 %v1376
    %1809 = vmatprep.subr.bf16.mxu0 %v1381
    %1810 = vmatpush1.bf16.msra.mxu0 %v1380
    %1811 = vmatprep.subr.bf16.mxu0 %v1385
    %1812 = vmatpush1.bf16.msra.mxu0 %v1384
    %1813 = vmatprep.subr.bf16.mxu0 %v1389
    %1814 = vmatpush1.bf16.msra.mxu0 %v1388
    %1815 = vmatprep.subr.bf16.mxu0 %v1393
    %1816 = vmatpush1.bf16.msra.mxu0 %v1392
    %1817 = vmatprep.subr.bf16.mxu0 %v1397
    %1818 = vmatpush1.bf16.msra.mxu0 %v1396
    %1819 = vmatprep.subr.bf16.mxu0 %v1401
    %1820 = vmatpush1.bf16.msra.mxu0 %v1400
    %1821 = vmatprep.mubr.bf16.mxu0 %v371
    %1822 = vmatmul.mubr.bf16.gmra.mrb[0].mxu0 %v370
    %v1823 = vpop.f32.mrb[0].mxu0
    %v1824 = vadd.f32 %v1781, %v1823
    %v1825 = vpop.f32.mrb[0].mxu0
    %v1826 = vadd.f32 %v1783, %v1825
    %v1827 = vpop.f32.mrb[0].mxu0
    %v1828 = vadd.f32 %v1785, %v1827
    %v1829 = vpop.f32.mrb[0].mxu0
    %v1830 = vadd.f32 %v1787, %v1829
    %1831 = vdwg.mxu0
    %1832 = vmatprep.subr.bf16.mxu0 %v1151
    %1833 = vmatpush1.bf16.msra.mxu0 %v1150
    %1834 = vmatprep.subr.bf16.mxu0 %v1155
    %1835 = vmatpush1.bf16.msra.mxu0 %v1154
    %1836 = vmatprep.subr.bf16.mxu0 %v1159
    %1837 = vmatpush1.bf16.msra.mxu0 %v1158
    %1838 = vmatprep.subr.bf16.mxu0 %v1163
    %1839 = vmatpush1.bf16.msra.mxu0 %v1162
    %1840 = vmatprep.subr.bf16.mxu0 %v1167
    %1841 = vmatpush1.bf16.msra.mxu0 %v1166
    %1842 = vmatprep.subr.bf16.mxu0 %v1171
    %1843 = vmatpush1.bf16.msra.mxu0 %v1170
    %1844 = vmatprep.subr.bf16.mxu0 %v1175
    %1845 = vmatpush1.bf16.msra.mxu0 %v1174
    %1846 = vmatprep.subr.bf16.mxu0 %v1179
    %1847 = vmatpush1.bf16.msra.mxu0 %v1178
    %1848 = vmatprep.subr.bf16.mxu0 %v1183
    %1849 = vmatpush1.bf16.msra.mxu0 %v1182
    %1850 = vmatprep.subr.bf16.mxu0 %v1187
    %1851 = vmatpush1.bf16.msra.mxu0 %v1186
    %1852 = vmatprep.subr.bf16.mxu0 %v1191
    %1853 = vmatpush1.bf16.msra.mxu0 %v1190
    %1854 = vmatprep.subr.bf16.mxu0 %v1195
    %1855 = vmatpush1.bf16.msra.mxu0 %v1194
    %1856 = vmatprep.subr.bf16.mxu0 %v1199
    %1857 = vmatpush1.bf16.msra.mxu0 %v1198
    %1858 = vmatprep.subr.bf16.mxu0 %v1203
    %1859 = vmatpush1.bf16.msra.mxu0 %v1202
    %1860 = vmatprep.subr.bf16.mxu0 %v1207
    %1861 = vmatpush1.bf16.msra.mxu0 %v1206
    %1862 = vmatprep.subr.bf16.mxu0 %v1211
    %1863 = vmatpush1.bf16.msra.mxu0 %v1210
    %1864 = vmatprep.mubr.bf16.mxu0 %v365
    %1865 = vmatmul.mubr.bf16.gmra.mrb[0].mxu0 %v364
    %v1866 = vpop.f32.mrb[0].mxu0
    %v1867 = vadd.f32 0.0, %v1866
    %v1868 = vpop.f32.mrb[0].mxu0
    %v1869 = vadd.f32 0.0, %v1868
    %v1870 = vpop.f32.mrb[0].mxu0
    %v1871 = vadd.f32 0.0, %v1870
    %v1872 = vpop.f32.mrb[0].mxu0
    %v1873 = vadd.f32 0.0, %v1872
    %1874 = vdwg.mxu0
    %1875 = vmatprep.subr.bf16.mxu0 %v1215
    %1876 = vmatpush1.bf16.msra.mxu0 %v1214
    %1877 = vmatprep.subr.bf16.mxu0 %v1219
    %1878 = vmatpush1.bf16.msra.mxu0 %v1218
    %1879 = vmatprep.subr.bf16.mxu0 %v1223
    %1880 = vmatpush1.bf16.msra.mxu0 %v1222
    %1881 = vmatprep.subr.bf16.mxu0 %v1227
    %1882 = vmatpush1.bf16.msra.mxu0 %v1226
    %1883 = vmatprep.subr.bf16.mxu0 %v1231
    %1884 = vmatpush1.bf16.msra.mxu0 %v1230
    %1885 = vmatprep.subr.bf16.mxu0 %v1235
    %1886 = vmatpush1.bf16.msra.mxu0 %v1234
    %1887 = vmatprep.subr.bf16.mxu0 %v1239
    %1888 = vmatpush1.bf16.msra.mxu0 %v1238
    %1889 = vmatprep.subr.bf16.mxu0 %v1243
    %1890 = vmatpush1.bf16.msra.mxu0 %v1242
    %1891 = vmatprep.subr.bf16.mxu0 %v1247
    %1892 = vmatpush1.bf16.msra.mxu0 %v1246
    %1893 = vmatprep.subr.bf16.mxu0 %v1251
    %1894 = vmatpush1.bf16.msra.mxu0 %v1250
    %1895 = vmatprep.subr.bf16.mxu0 %v1255
    %1896 = vmatpush1.bf16.msra.mxu0 %v1254
    %1897 = vmatprep.subr.bf16.mxu0 %v1259
    %1898 = vmatpush1.bf16.msra.mxu0 %v1258
    %1899 = vmatprep.subr.bf16.mxu0 %v1263
    %1900 = vmatpush1.bf16.msra.mxu0 %v1262
    %1901 = vmatprep.subr.bf16.mxu0 %v1267
    %1902 = vmatpush1.bf16.msra.mxu0 %v1266
    %1903 = vmatprep.subr.bf16.mxu0 %v1271
    %1904 = vmatpush1.bf16.msra.mxu0 %v1270
    %1905 = vmatprep.subr.bf16.mxu0 %v1275
    %1906 = vmatpush1.bf16.msra.mxu0 %v1274
    %1907 = vmatprep.mubr.bf16.mxu0 %v367
    %1908 = vmatmul.mubr.bf16.gmra.mrb[0].mxu0 %v366
    %v1909 = vpop.f32.mrb[0].mxu0
    %v1910 = vadd.f32 %v1867, %v1909
    %v1911 = vpop.f32.mrb[0].mxu0
    %v1912 = vadd.f32 %v1869, %v1911
    %v1913 = vpop.f32.mrb[0].mxu0
    %v1914 = vadd.f32 %v1871, %v1913
    %v1915 = vpop.f32.mrb[0].mxu0
    %v1916 = vadd.f32 %v1873, %v1915
    %1917 = vdwg.mxu0
    %1918 = vmatprep.subr.bf16.mxu0 %v1279
    %1919 = vmatpush1.bf16.msra.mxu0 %v1278
    %1920 = vmatprep.subr.bf16.mxu0 %v1283
    %1921 = vmatpush1.bf16.msra.mxu0 %v1282
    %1922 = vmatprep.subr.bf16.mxu0 %v1287
    %1923 = vmatpush1.bf16.msra.mxu0 %v1286
    %1924 = vmatprep.subr.bf16.mxu0 %v1291
    %1925 = vmatpush1.bf16.msra.mxu0 %v1290
    %1926 = vmatprep.subr.bf16.mxu0 %v1295
    %1927 = vmatpush1.bf16.msra.mxu0 %v1294
    %1928 = vmatprep.subr.bf16.mxu0 %v1299
    %1929 = vmatpush1.bf16.msra.mxu0 %v1298
    %1930 = vmatprep.subr.bf16.mxu0 %v1303
    %1931 = vmatpush1.bf16.msra.mxu0 %v1302
    %1932 = vmatprep.subr.bf16.mxu0 %v1307
    %1933 = vmatpush1.bf16.msra.mxu0 %v1306
    %1934 = vmatprep.subr.bf16.mxu0 %v1311
    %1935 = vmatpush1.bf16.msra.mxu0 %v1310
    %1936 = vmatprep.subr.bf16.mxu0 %v1315
    %1937 = vmatpush1.bf16.msra.mxu0 %v1314
    %1938 = vmatprep.subr.bf16.mxu0 %v1319
    %1939 = vmatpush1.bf16.msra.mxu0 %v1318
    %1940 = vmatprep.subr.bf16.mxu0 %v1323
    %1941 = vmatpush1.bf16.msra.mxu0 %v1322
    %1942 = vmatprep.subr.bf16.mxu0 %v1327
    %1943 = vmatpush1.bf16.msra.mxu0 %v1326
    %1944 = vmatprep.subr.bf16.mxu0 %v1331
    %1945 = vmatpush1.bf16.msra.mxu0 %v1330
    %1946 = vmatprep.subr.bf16.mxu0 %v1335
    %1947 = vmatpush1.bf16.msra.mxu0 %v1334
    %1948 = vmatprep.subr.bf16.mxu0 %v1339
    %1949 = vmatpush1.bf16.msra.mxu0 %v1338
    %1950 = vmatprep.mubr.bf16.mxu0 %v369
    %1951 = vmatmul.mubr.bf16.gmra.mrb[0].mxu0 %v368
    %v1952 = vpop.f32.mrb[0].mxu0
    %v1953 = vadd.f32 %v1910, %v1952
    %v1954 = vpop.f32.mrb[0].mxu0
    %v1955 = vadd.f32 %v1912, %v1954
    %v1956 = vpop.f32.mrb[0].mxu0
    %v1957 = vadd.f32 %v1914, %v1956
    %v1958 = vpop.f32.mrb[0].mxu0
    %v1959 = vadd.f32 %v1916, %v1958
    %1960 = vdwg.mxu0
    %1961 = vmatprep.subr.bf16.mxu0 %v1343
    %1962 = vmatpush1.bf16.msra.mxu0 %v1342
    %1963 = vmatprep.subr.bf16.mxu0 %v1347
    %1964 = vmatpush1.bf16.msra.mxu0 %v1346
    %1965 = vmatprep.subr.bf16.mxu0 %v1351
    %1966 = vmatpush1.bf16.msra.mxu0 %v1350
    %1967 = vmatprep.subr.bf16.mxu0 %v1355
    %1968 = vmatpush1.bf16.msra.mxu0 %v1354
    %1969 = vmatprep.subr.bf16.mxu0 %v1359
    %1970 = vmatpush1.bf16.msra.mxu0 %v1358
    %1971 = vmatprep.subr.bf16.mxu0 %v1363
    %1972 = vmatpush1.bf16.msra.mxu0 %v1362
    %1973 = vmatprep.subr.bf16.mxu0 %v1367
    %1974 = vmatpush1.bf16.msra.mxu0 %v1366
    %1975 = vmatprep.subr.bf16.mxu0 %v1371
    %1976 = vmatpush1.bf16.msra.mxu0 %v1370
    %1977 = vmatprep.subr.bf16.mxu0 %v1375
    %1978 = vmatpush1.bf16.msra.mxu0 %v1374
    %1979 = vmatprep.subr.bf16.mxu0 %v1379
    %1980 = vmatpush1.bf16.msra.mxu0 %v1378
    %1981 = vmatprep.subr.bf16.mxu0 %v1383
    %1982 = vmatpush1.bf16.msra.mxu0 %v1382
    %1983 = vmatprep.subr.bf16.mxu0 %v1387
    %1984 = vmatpush1.bf16.msra.mxu0 %v1386
    %1985 = vmatprep.subr.bf16.mxu0 %v1391
    %1986 = vmatpush1.bf16.msra.mxu0 %v1390
    %1987 = vmatprep.subr.bf16.mxu0 %v1395
    %1988 = vmatpush1.bf16.msra.mxu0 %v1394
    %1989 = vmatprep.subr.bf16.mxu0 %v1399
    %1990 = vmatpush1.bf16.msra.mxu0 %v1398
    %1991 = vmatprep.subr.bf16.mxu0 %v1403
    %1992 = vmatpush1.bf16.msra.mxu0 %v1402
    %1993 = vmatprep.mubr.bf16.mxu0 %v371
    %1994 = vmatmul.mubr.bf16.gmra.mrb[0].mxu0 %v370
    %v1995 = vpop.f32.mrb[0].mxu0
    %v1996 = vadd.f32 %v1953, %v1995
    %v1997 = vpop.f32.mrb[0].mxu0
    %v1998 = vadd.f32 %v1955, %v1997
    %v1999 = vpop.f32.mrb[0].mxu0
    %v2000 = vadd.f32 %v1957, %v1999
    %v2001 = vpop.f32.mrb[0].mxu0
    %v2002 = vadd.f32 %v1959, %v2001
    %2003 = vdwg.mxu0
    %v2004 = vadd.f32 %v68, %v1824
    %v2005 = vadd.f32 %v69, %v1826
    %v2006 = vadd.f32 %v70, %v1996
    %v2007 = vadd.f32 %v71, %v1998
    %v2008 = vadd.f32 %v72, %v1828
    %v2009 = vadd.f32 %v73, %v1830
    %v2010 = vadd.f32 %v74, %v2000
    %v2011 = vadd.f32 %v75, %v2002
    %2012 = vst [vmem:[#allocation2] sm:$0xff] %v2004
    %2013 = vst [vmem:[#allocation2 + $0x8] sm:$0xff] %v2005
    %2014 = vst [vmem:[#allocation2 + $0x10] sm:$0xff] %v2006
    %2015 = vst [vmem:[#allocation2 + $0x18] sm:$0xff] %v2007
    %2016 = vst [vmem:[#allocation2 + $0x20] sm:$0xff] %v2008
    %2017 = vst [vmem:[#allocation2 + $0x28] sm:$0xff] %v2009
    %2018 = vst [vmem:[#allocation2 + $0x30] sm:$0xff] %v2010
    %2019 = vst [vmem:[#allocation2 + $0x38] sm:$0xff] %v2011
    // Predicated region
    $region42: #{discriminator_forward.1} parent=1 // pred_check
      %p2020 = pneg %p56
    $region43: #{discriminator_forward.1} parent=1 // pred_check_branch
      %2022 = sbr.rel (%p2020) target = $region45
    $region44: #{discriminator_forward.1} parent=1 // pred_region
      %v2023 = vld [vmem:[#allocation2] sm:$0xff]
      %v2024 = vld [vmem:[#allocation2 + $0x8] sm:$0xff]
      %v2025 = vld [vmem:[#allocation2 + $0x10] sm:$0xff]
      %v2026 = vld [vmem:[#allocation2 + $0x18] sm:$0xff]
      %v2027 = vld [vmem:[#allocation2 + $0x20] sm:$0xff]
      %v2028 = vld [vmem:[#allocation2 + $0x28] sm:$0xff]
      %v2029 = vld [vmem:[#allocation2 + $0x30] sm:$0xff]
      %v2030 = vld [vmem:[#allocation2 + $0x38] sm:$0xff]
      %v2031 = vld [vmem:[%s2] sm:$0xf]
      %v2033 = vlaneseq
      %v2034 = vshrl.u32 %v2033, 7
      %v2035 = vsub.s32 0, %v2034
      %v2036 = vrot.slane %v2031, %v2035
      %v2037 = vlaneseq
      %v2038 = vshrl.u32 %v2037, 7
      %v2039 = vsub.s32 1, %v2038
      %v2040 = vrot.slane %v2031, %v2039
      %v2041 = vlaneseq
      %v2042 = vshrl.u32 %v2041, 7
      %v2043 = vsub.s32 2, %v2042
      %v2044 = vrot.slane %v2031, %v2043
      %v2045 = vlaneseq
      %v2046 = vshrl.u32 %v2045, 7
      %v2047 = vsub.s32 3, %v2046
      %v2048 = vrot.slane %v2031, %v2047
      %v2053 = vadd.f32 %v2023, %v2036
      %v2054 = vadd.f32 %v2024, %v2040
      %v2055 = vadd.f32 %v2025, %v2044
      %v2056 = vadd.f32 %v2026, %v2048
      %v2057 = vadd.f32 %v2027, %v2036
      %v2058 = vadd.f32 %v2028, %v2040
      %v2059 = vadd.f32 %v2029, %v2044
      %v2060 = vadd.f32 %v2030, %v2048
      %vm2061 = vcmp.gt.f32.partialorder %v2053, 0.0
      %vm2062 = vcmp.gt.f32.partialorder %v2054, 0.0
      %vm2063 = vcmp.gt.f32.partialorder %v2055, 0.0
      %vm2064 = vcmp.gt.f32.partialorder %v2056, 0.0
      %vm2065 = vcmp.gt.f32.partialorder %v2057, 0.0
      %vm2066 = vcmp.gt.f32.partialorder %v2058, 0.0
      %vm2067 = vcmp.gt.f32.partialorder %v2059, 0.0
      %vm2068 = vcmp.gt.f32.partialorder %v2060, 0.0
      %v2069 = vmul.f32 %v2053, 0.2
      %v2070 = vmul.f32 %v2054, 0.2
      %v2071 = vmul.f32 %v2055, 0.2
      %v2072 = vmul.f32 %v2056, 0.2
      %v2073 = vmul.f32 %v2057, 0.2
      %v2074 = vmul.f32 %v2058, 0.2
      %v2075 = vmul.f32 %v2059, 0.2
      %v2076 = vmul.f32 %v2060, 0.2
      %v2077 = vsel %vm2061, %v2053, %v2069
      %v2078 = vsel %vm2062, %v2054, %v2070
      %v2079 = vsel %vm2063, %v2055, %v2071
      %v2080 = vsel %vm2064, %v2056, %v2072
      %v2081 = vsel %vm2065, %v2057, %v2073
      %v2082 = vsel %vm2066, %v2058, %v2074
      %v2083 = vsel %vm2067, %v2059, %v2075
      %v2084 = vsel %vm2068, %v2060, %v2076
      %v2085 = vpack.c.bf16 %v2081, %v2077
      %v2086 = vpack.c.bf16 %v2082, %v2078
      %v2087 = vpack.c.bf16 %v2083, %v2079
      %v2088 = vpack.c.bf16 %v2084, %v2080
      %v2089 = vld [vmem:[#allocation6] sm:$0xff]
      %v2090 = vld [vmem:[#allocation6 + $0x8] sm:$0xff]
      %v2091 = vld [vmem:[#allocation6 + $0x10] sm:$0xff]
      %v2092 = vld [vmem:[#allocation6 + $0x18] sm:$0xff]
      %v2093 = vld [vmem:[#allocation6 + $0x20] sm:$0xff]
      %v2094 = vld [vmem:[#allocation6 + $0x28] sm:$0xff]
      %v2095 = vld [vmem:[#allocation6 + $0x30] sm:$0xff]
      %v2096 = vld [vmem:[#allocation6 + $0x38] sm:$0xff]
      %v2097 = vld [vmem:[#allocation6 + $0x40] sm:$0xff]
      %v2098 = vld [vmem:[#allocation6 + $0x48] sm:$0xff]
      %v2099 = vld [vmem:[#allocation6 + $0x50] sm:$0xff]
      %v2100 = vld [vmem:[#allocation6 + $0x58] sm:$0xff]
      %v2101 = vld [vmem:[#allocation6 + $0x60] sm:$0xff]
      %v2102 = vld [vmem:[#allocation6 + $0x68] sm:$0xff]
      %v2103 = vld [vmem:[#allocation6 + $0x70] sm:$0xff]
      %v2104 = vld [vmem:[#allocation6 + $0x78] sm:$0xff]
      %v2105 = vld [vmem:[#allocation6 + $0x80] sm:$0xff]
      %v2106 = vld [vmem:[#allocation6 + $0x88] sm:$0xff]
      %v2107 = vld [vmem:[#allocation6 + $0x90] sm:$0xff]
      %v2108 = vld [vmem:[#allocation6 + $0x98] sm:$0xff]
      %v2109 = vld [vmem:[#allocation6 + $0xa0] sm:$0xff]
      %v2110 = vld [vmem:[#allocation6 + $0xa8] sm:$0xff]
      %v2111 = vld [vmem:[#allocation6 + $0xb0] sm:$0xff]
      %v2112 = vld [vmem:[#allocation6 + $0xb8] sm:$0xff]
      %v2113 = vld [vmem:[#allocation6 + $0xc0] sm:$0xff]
      %v2114 = vld [vmem:[#allocation6 + $0xc8] sm:$0xff]
      %v2115 = vld [vmem:[#allocation6 + $0xd0] sm:$0xff]
      %v2116 = vld [vmem:[#allocation6 + $0xd8] sm:$0xff]
      %v2117 = vld [vmem:[#allocation6 + $0xe0] sm:$0xff]
      %v2118 = vld [vmem:[#allocation6 + $0xe8] sm:$0xff]
      %v2119 = vld [vmem:[#allocation6 + $0xf0] sm:$0xff]
      %v2120 = vld [vmem:[#allocation6 + $0xf8] sm:$0xff]
      %v2121 = vld [vmem:[#allocation6 + $0x100] sm:$0xff]
      %v2122 = vld [vmem:[#allocation6 + $0x108] sm:$0xff]
      %v2123 = vld [vmem:[#allocation6 + $0x110] sm:$0xff]
      %v2124 = vld [vmem:[#allocation6 + $0x118] sm:$0xff]
      %v2125 = vld [vmem:[#allocation6 + $0x120] sm:$0xff]
      %v2126 = vld [vmem:[#allocation6 + $0x128] sm:$0xff]
      %v2127 = vld [vmem:[#allocation6 + $0x130] sm:$0xff]
      %v2128 = vld [vmem:[#allocation6 + $0x138] sm:$0xff]
      %v2129 = vld [vmem:[#allocation6 + $0x140] sm:$0xff]
      %v2130 = vld [vmem:[#allocation6 + $0x148] sm:$0xff]
      %v2131 = vld [vmem:[#allocation6 + $0x150] sm:$0xff]
      %v2132 = vld [vmem:[#allocation6 + $0x158] sm:$0xff]
      %v2133 = vld [vmem:[#allocation6 + $0x160] sm:$0xff]
      %v2134 = vld [vmem:[#allocation6 + $0x168] sm:$0xff]
      %v2135 = vld [vmem:[#allocation6 + $0x170] sm:$0xff]
      %v2136 = vld [vmem:[#allocation6 + $0x178] sm:$0xff]
      %v2137 = vld [vmem:[#allocation6 + $0x180] sm:$0xff]
      %v2138 = vld [vmem:[#allocation6 + $0x188] sm:$0xff]
      %v2139 = vld [vmem:[#allocation6 + $0x190] sm:$0xff]
      %v2140 = vld [vmem:[#allocation6 + $0x198] sm:$0xff]
      %v2141 = vld [vmem:[#allocation6 + $0x1a0] sm:$0xff]
      %v2142 = vld [vmem:[#allocation6 + $0x1a8] sm:$0xff]
      %v2143 = vld [vmem:[#allocation6 + $0x1b0] sm:$0xff]
      %v2144 = vld [vmem:[#allocation6 + $0x1b8] sm:$0xff]
      %v2145 = vld [vmem:[#allocation6 + $0x1c0] sm:$0xff]
      %v2146 = vld [vmem:[#allocation6 + $0x1c8] sm:$0xff]
      %v2147 = vld [vmem:[#allocation6 + $0x1d0] sm:$0xff]
      %v2148 = vld [vmem:[#allocation6 + $0x1d8] sm:$0xff]
      %v2149 = vld [vmem:[#allocation6 + $0x1e0] sm:$0xff]
      %v2150 = vld [vmem:[#allocation6 + $0x1e8] sm:$0xff]
      %v2151 = vld [vmem:[#allocation6 + $0x1f0] sm:$0xff]
      %v2152 = vld [vmem:[#allocation6 + $0x1f8] sm:$0xff]
      %v2153 = vld [vmem:[%s4] sm:$0x3]
      %v2155 = vlaneseq
      %v2156 = vshrl.u32 %v2155, 7
      %v2157 = vsub.s32 0, %v2156
      %v2158 = vrot.slane %v2153, %v2157
      %v2159 = vlaneseq
      %v2160 = vshrl.u32 %v2159, 7
      %v2161 = vsub.s32 1, %v2160
      %v2162 = vrot.slane %v2153, %v2161
      %v2229 = vunpack.c.l.b16 %v2089
      %v2230 = vunpack.c.h.b16 %v2089
      %v2231 = vunpack.c.l.b16 %v2090
      %v2232 = vunpack.c.h.b16 %v2090
      %v2233 = vunpack.c.l.b16 %v2091
      %v2234 = vunpack.c.h.b16 %v2091
      %v2235 = vunpack.c.l.b16 %v2092
      %v2236 = vunpack.c.h.b16 %v2092
      %v2237 = vunpack.c.l.b16 %v2093
      %v2238 = vunpack.c.h.b16 %v2093
      %v2239 = vunpack.c.l.b16 %v2094
      %v2240 = vunpack.c.h.b16 %v2094
      %v2241 = vunpack.c.l.b16 %v2095
      %v2242 = vunpack.c.h.b16 %v2095
      %v2243 = vunpack.c.l.b16 %v2096
      %v2244 = vunpack.c.h.b16 %v2096
      %v2245 = vunpack.c.l.b16 %v2097
      %v2246 = vunpack.c.h.b16 %v2097
      %v2247 = vunpack.c.l.b16 %v2098
      %v2248 = vunpack.c.h.b16 %v2098
      %v2249 = vunpack.c.l.b16 %v2099
      %v2250 = vunpack.c.h.b16 %v2099
      %v2251 = vunpack.c.l.b16 %v2100
      %v2252 = vunpack.c.h.b16 %v2100
      %v2253 = vunpack.c.l.b16 %v2101
      %v2254 = vunpack.c.h.b16 %v2101
      %v2255 = vunpack.c.l.b16 %v2102
      %v2256 = vunpack.c.h.b16 %v2102
      %v2257 = vunpack.c.l.b16 %v2103
      %v2258 = vunpack.c.h.b16 %v2103
      %v2259 = vunpack.c.l.b16 %v2104
      %v2260 = vunpack.c.h.b16 %v2104
      %v2261 = vunpack.c.l.b16 %v2105
      %v2262 = vunpack.c.h.b16 %v2105
      %v2263 = vunpack.c.l.b16 %v2106
      %v2264 = vunpack.c.h.b16 %v2106
      %v2265 = vunpack.c.l.b16 %v2107
      %v2266 = vunpack.c.h.b16 %v2107
      %v2267 = vunpack.c.l.b16 %v2108
      %v2268 = vunpack.c.h.b16 %v2108
      %v2269 = vunpack.c.l.b16 %v2109
      %v2270 = vunpack.c.h.b16 %v2109
      %v2271 = vunpack.c.l.b16 %v2110
      %v2272 = vunpack.c.h.b16 %v2110
      %v2273 = vunpack.c.l.b16 %v2111
      %v2274 = vunpack.c.h.b16 %v2111
      %v2275 = vunpack.c.l.b16 %v2112
      %v2276 = vunpack.c.h.b16 %v2112
      %v2277 = vunpack.c.l.b16 %v2113
      %v2278 = vunpack.c.h.b16 %v2113
      %v2279 = vunpack.c.l.b16 %v2114
      %v2280 = vunpack.c.h.b16 %v2114
      %v2281 = vunpack.c.l.b16 %v2115
      %v2282 = vunpack.c.h.b16 %v2115
      %v2283 = vunpack.c.l.b16 %v2116
      %v2284 = vunpack.c.h.b16 %v2116
      %v2285 = vunpack.c.l.b16 %v2117
      %v2286 = vunpack.c.h.b16 %v2117
      %v2287 = vunpack.c.l.b16 %v2118
      %v2288 = vunpack.c.h.b16 %v2118
      %v2289 = vunpack.c.l.b16 %v2119
      %v2290 = vunpack.c.h.b16 %v2119
      %v2291 = vunpack.c.l.b16 %v2120
      %v2292 = vunpack.c.h.b16 %v2120
      %v2293 = vunpack.c.l.b16 %v2121
      %v2294 = vunpack.c.h.b16 %v2121
      %v2295 = vunpack.c.l.b16 %v2122
      %v2296 = vunpack.c.h.b16 %v2122
      %v2297 = vunpack.c.l.b16 %v2123
      %v2298 = vunpack.c.h.b16 %v2123
      %v2299 = vunpack.c.l.b16 %v2124
      %v2300 = vunpack.c.h.b16 %v2124
      %v2301 = vunpack.c.l.b16 %v2125
      %v2302 = vunpack.c.h.b16 %v2125
      %v2303 = vunpack.c.l.b16 %v2126
      %v2304 = vunpack.c.h.b16 %v2126
      %v2305 = vunpack.c.l.b16 %v2127
      %v2306 = vunpack.c.h.b16 %v2127
      %v2307 = vunpack.c.l.b16 %v2128
      %v2308 = vunpack.c.h.b16 %v2128
      %v2309 = vunpack.c.l.b16 %v2129
      %v2310 = vunpack.c.h.b16 %v2129
      %v2311 = vunpack.c.l.b16 %v2130
      %v2312 = vunpack.c.h.b16 %v2130
      %v2313 = vunpack.c.l.b16 %v2131
      %v2314 = vunpack.c.h.b16 %v2131
      %v2315 = vunpack.c.l.b16 %v2132
      %v2316 = vunpack.c.h.b16 %v2132
      %v2317 = vunpack.c.l.b16 %v2133
      %v2318 = vunpack.c.h.b16 %v2133
      %v2319 = vunpack.c.l.b16 %v2134
      %v2320 = vunpack.c.h.b16 %v2134
      %v2321 = vunpack.c.l.b16 %v2135
      %v2322 = vunpack.c.h.b16 %v2135
      %v2323 = vunpack.c.l.b16 %v2136
      %v2324 = vunpack.c.h.b16 %v2136
      %v2325 = vunpack.c.l.b16 %v2137
      %v2326 = vunpack.c.h.b16 %v2137
      %v2327 = vunpack.c.l.b16 %v2138
      %v2328 = vunpack.c.h.b16 %v2138
      %v2329 = vunpack.c.l.b16 %v2139
      %v2330 = vunpack.c.h.b16 %v2139
      %v2331 = vunpack.c.l.b16 %v2140
      %v2332 = vunpack.c.h.b16 %v2140
      %v2333 = vunpack.c.l.b16 %v2141
      %v2334 = vunpack.c.h.b16 %v2141
      %v2335 = vunpack.c.l.b16 %v2142
      %v2336 = vunpack.c.h.b16 %v2142
      %v2337 = vunpack.c.l.b16 %v2143
      %v2338 = vunpack.c.h.b16 %v2143
      %v2339 = vunpack.c.l.b16 %v2144
      %v2340 = vunpack.c.h.b16 %v2144
      %v2341 = vunpack.c.l.b16 %v2145
      %v2342 = vunpack.c.h.b16 %v2145
      %v2343 = vunpack.c.l.b16 %v2146
      %v2344 = vunpack.c.h.b16 %v2146
      %v2345 = vunpack.c.l.b16 %v2147
      %v2346 = vunpack.c.h.b16 %v2147
      %v2347 = vunpack.c.l.b16 %v2148
      %v2348 = vunpack.c.h.b16 %v2148
      %v2349 = vunpack.c.l.b16 %v2149
      %v2350 = vunpack.c.h.b16 %v2149
      %v2351 = vunpack.c.l.b16 %v2150
      %v2352 = vunpack.c.h.b16 %v2150
      %v2353 = vunpack.c.l.b16 %v2151
      %v2354 = vunpack.c.h.b16 %v2151
      %v2355 = vunpack.c.l.b16 %v2152
      %v2356 = vunpack.c.h.b16 %v2152
      %v2357 = vpack.c.b16 %v2231, %v2229
      %v2358 = vpack.c.b16 %v2232, %v2230
      %v2359 = vpack.c.b16 %v2235, %v2233
      %v2360 = vpack.c.b16 %v2236, %v2234
      %v2361 = vpack.c.b16 %v2239, %v2237
      %v2362 = vpack.c.b16 %v2240, %v2238
      %v2363 = vpack.c.b16 %v2243, %v2241
      %v2364 = vpack.c.b16 %v2244, %v2242
      %v2365 = vpack.c.b16 %v2247, %v2245
      %v2366 = vpack.c.b16 %v2248, %v2246
      %v2367 = vpack.c.b16 %v2251, %v2249
      %v2368 = vpack.c.b16 %v2252, %v2250
      %v2369 = vpack.c.b16 %v2255, %v2253
      %v2370 = vpack.c.b16 %v2256, %v2254
      %v2371 = vpack.c.b16 %v2259, %v2257
      %v2372 = vpack.c.b16 %v2260, %v2258
      %v2373 = vpack.c.b16 %v2263, %v2261
      %v2374 = vpack.c.b16 %v2264, %v2262
      %v2375 = vpack.c.b16 %v2267, %v2265
      %v2376 = vpack.c.b16 %v2268, %v2266
      %v2377 = vpack.c.b16 %v2271, %v2269
      %v2378 = vpack.c.b16 %v2272, %v2270
      %v2379 = vpack.c.b16 %v2275, %v2273
      %v2380 = vpack.c.b16 %v2276, %v2274
      %v2381 = vpack.c.b16 %v2279, %v2277
      %v2382 = vpack.c.b16 %v2280, %v2278
      %v2383 = vpack.c.b16 %v2283, %v2281
      %v2384 = vpack.c.b16 %v2284, %v2282
      %v2385 = vpack.c.b16 %v2287, %v2285
      %v2386 = vpack.c.b16 %v2288, %v2286
      %v2387 = vpack.c.b16 %v2291, %v2289
      %v2388 = vpack.c.b16 %v2292, %v2290
      %v2389 = vpack.c.b16 %v2295, %v2293
      %v2390 = vpack.c.b16 %v2296, %v2294
      %v2391 = vpack.c.b16 %v2299, %v2297
      %v2392 = vpack.c.b16 %v2300, %v2298
      %v2393 = vpack.c.b16 %v2303, %v2301
      %v2394 = vpack.c.b16 %v2304, %v2302
      %v2395 = vpack.c.b16 %v2307, %v2305
      %v2396 = vpack.c.b16 %v2308, %v2306
      %v2397 = vpack.c.b16 %v2311, %v2309
      %v2398 = vpack.c.b16 %v2312, %v2310
      %v2399 = vpack.c.b16 %v2315, %v2313
      %v2400 = vpack.c.b16 %v2316, %v2314
      %v2401 = vpack.c.b16 %v2319, %v2317
      %v2402 = vpack.c.b16 %v2320, %v2318
      %v2403 = vpack.c.b16 %v2323, %v2321
      %v2404 = vpack.c.b16 %v2324, %v2322
      %v2405 = vpack.c.b16 %v2327, %v2325
      %v2406 = vpack.c.b16 %v2328, %v2326
      %v2407 = vpack.c.b16 %v2331, %v2329
      %v2408 = vpack.c.b16 %v2332, %v2330
      %v2409 = vpack.c.b16 %v2335, %v2333
      %v2410 = vpack.c.b16 %v2336, %v2334
      %v2411 = vpack.c.b16 %v2339, %v2337
      %v2412 = vpack.c.b16 %v2340, %v2338
      %v2413 = vpack.c.b16 %v2343, %v2341
      %v2414 = vpack.c.b16 %v2344, %v2342
      %v2415 = vpack.c.b16 %v2347, %v2345
      %v2416 = vpack.c.b16 %v2348, %v2346
      %v2417 = vpack.c.b16 %v2351, %v2349
      %v2418 = vpack.c.b16 %v2352, %v2350
      %v2419 = vpack.c.b16 %v2355, %v2353
      %v2420 = vpack.c.b16 %v2356, %v2354
      %2485 = vmatprep.subr.bf16.mxu0 %v2358
      %2486 = vmatpush1.bf16.msra.mxu0 %v2357
      %2487 = vmatprep.subr.bf16.mxu0 %v2360
      %2488 = vmatpush1.bf16.msra.mxu0 %v2359
      %2489 = vmatprep.subr.bf16.mxu0 %v2362
      %2490 = vmatpush1.bf16.msra.mxu0 %v2361
      %2491 = vmatprep.subr.bf16.mxu0 %v2364
      %2492 = vmatpush1.bf16.msra.mxu0 %v2363
      %2493 = vmatprep.subr.bf16.mxu0 %v2366
      %2494 = vmatpush1.bf16.msra.mxu0 %v2365
      %2495 = vmatprep.subr.bf16.mxu0 %v2368
      %2496 = vmatpush1.bf16.msra.mxu0 %v2367
      %2497 = vmatprep.subr.bf16.mxu0 %v2370
      %2498 = vmatpush1.bf16.msra.mxu0 %v2369
      %2499 = vmatprep.subr.bf16.mxu0 %v2372
      %2500 = vmatpush1.bf16.msra.mxu0 %v2371
      %2501 = vmatprep.subr.bf16.mxu0 %v2374
      %2502 = vmatpush1.bf16.msra.mxu0 %v2373
      %2503 = vmatprep.subr.bf16.mxu0 %v2376
      %2504 = vmatpush1.bf16.msra.mxu0 %v2375
      %2505 = vmatprep.subr.bf16.mxu0 %v2378
      %2506 = vmatpush1.bf16.msra.mxu0 %v2377
      %2507 = vmatprep.subr.bf16.mxu0 %v2380
      %2508 = vmatpush1.bf16.msra.mxu0 %v2379
      %2509 = vmatprep.subr.bf16.mxu0 %v2382
      %2510 = vmatpush1.bf16.msra.mxu0 %v2381
      %2511 = vmatprep.subr.bf16.mxu0 %v2384
      %2512 = vmatpush1.bf16.msra.mxu0 %v2383
      %2513 = vmatprep.subr.bf16.mxu0 %v2386
      %2514 = vmatpush1.bf16.msra.mxu0 %v2385
      %2515 = vmatprep.subr.bf16.mxu0 %v2388
      %2516 = vmatpush1.bf16.msra.mxu0 %v2387
      %2517 = vmatprep.mubr.bf16.mxu0 %v2086
      %2518 = vmatmul.mubr.bf16.gmra.mrb[0].mxu0 %v2085
      %v2519 = vpop.f32.mrb[0].mxu0
      %v2520 = vadd.f32 %v2158, %v2519
      %v2521 = vpop.f32.mrb[0].mxu0
      %v2522 = vadd.f32 %v2162, %v2521
      %v2523 = vpop.f32.mrb[0].mxu0
      %v2524 = vadd.f32 %v2158, %v2523
      %v2525 = vpop.f32.mrb[0].mxu0
      %v2526 = vadd.f32 %v2162, %v2525
      %2527 = vdwg.mxu0
      %2528 = vmatprep.subr.bf16.mxu0 %v2390
      %2529 = vmatpush1.bf16.msra.mxu0 %v2389
      %2530 = vmatprep.subr.bf16.mxu0 %v2392
      %2531 = vmatpush1.bf16.msra.mxu0 %v2391
      %2532 = vmatprep.subr.bf16.mxu0 %v2394
      %2533 = vmatpush1.bf16.msra.mxu0 %v2393
      %2534 = vmatprep.subr.bf16.mxu0 %v2396
      %2535 = vmatpush1.bf16.msra.mxu0 %v2395
      %2536 = vmatprep.subr.bf16.mxu0 %v2398
      %2537 = vmatpush1.bf16.msra.mxu0 %v2397
      %2538 = vmatprep.subr.bf16.mxu0 %v2400
      %2539 = vmatpush1.bf16.msra.mxu0 %v2399
      %2540 = vmatprep.subr.bf16.mxu0 %v2402
      %2541 = vmatpush1.bf16.msra.mxu0 %v2401
      %2542 = vmatprep.subr.bf16.mxu0 %v2404
      %2543 = vmatpush1.bf16.msra.mxu0 %v2403
      %2544 = vmatprep.subr.bf16.mxu0 %v2406
      %2545 = vmatpush1.bf16.msra.mxu0 %v2405
      %2546 = vmatprep.subr.bf16.mxu0 %v2408
      %2547 = vmatpush1.bf16.msra.mxu0 %v2407
      %2548 = vmatprep.subr.bf16.mxu0 %v2410
      %2549 = vmatpush1.bf16.msra.mxu0 %v2409
      %2550 = vmatprep.subr.bf16.mxu0 %v2412
      %2551 = vmatpush1.bf16.msra.mxu0 %v2411
      %2552 = vmatprep.subr.bf16.mxu0 %v2414
      %2553 = vmatpush1.bf16.msra.mxu0 %v2413
      %2554 = vmatprep.subr.bf16.mxu0 %v2416
      %2555 = vmatpush1.bf16.msra.mxu0 %v2415
      %2556 = vmatprep.subr.bf16.mxu0 %v2418
      %2557 = vmatpush1.bf16.msra.mxu0 %v2417
      %2558 = vmatprep.subr.bf16.mxu0 %v2420
      %2559 = vmatpush1.bf16.msra.mxu0 %v2419
      %2560 = vmatprep.mubr.bf16.mxu0 %v2088
      %2561 = vmatmul.mubr.bf16.gmra.mrb[0].mxu0 %v2087
      %v2562 = vpop.f32.mrb[0].mxu0
      %v2563 = vadd.f32 %v2520, %v2562
      %v2564 = vpop.f32.mrb[0].mxu0
      %v2565 = vadd.f32 %v2522, %v2564
      %v2566 = vpop.f32.mrb[0].mxu0
      %v2567 = vadd.f32 %v2524, %v2566
      %v2568 = vpop.f32.mrb[0].mxu0
      %v2569 = vadd.f32 %v2526, %v2568
      %2570 = vdwg.mxu0
      %vm2571 = vcmp.gt.f32.partialorder %v2563, 0.0
      %vm2572 = vcmp.gt.f32.partialorder %v2565, 0.0
      %vm2573 = vcmp.gt.f32.partialorder %v2567, 0.0
      %vm2574 = vcmp.gt.f32.partialorder %v2569, 0.0
      %v2575 = vmul.f32 %v2563, 0.2
      %v2576 = vmul.f32 %v2565, 0.2
      %v2577 = vmul.f32 %v2567, 0.2
      %v2578 = vmul.f32 %v2569, 0.2
      %v2579 = vsel %vm2571, %v2563, %v2575
      %v2580 = vsel %vm2572, %v2565, %v2576
      %v2581 = vsel %vm2573, %v2567, %v2577
      %v2582 = vsel %vm2574, %v2569, %v2578
      %v2583 = vld [vmem:[%s5] sm:$0x3]
      %v2585 = vlaneseq
      %v2586 = vshrl.u32 %v2585, 7
      %v2587 = vsub.s32 0, %v2586
      %v2588 = vrot.slane %v2583, %v2587
      %v2589 = vlaneseq
      %v2590 = vshrl.u32 %v2589, 7
      %v2591 = vsub.s32 1, %v2590
      %v2592 = vrot.slane %v2583, %v2591
      %v2595 = vmul.f32 %v2579, %v2588
      %v2596 = vmul.f32 %v2580, %v2592
      %v2597 = vmul.f32 %v2581, %v2588
      %v2598 = vmul.f32 %v2582, %v2592
      %v2599 = vadd.f32 %v2595, %v2596
      %2600 = vadd.xlane.f32.xlu0 %v2599
      %v2601 = vpop.xlane.xlu0 %2600
      %v2602 = vadd.f32 %v2597, %v2598
      %2603 = vadd.xlane.f32.xlu0 %v2602
      %v2604 = vpop.xlane.xlu0 %2603
      %v2605 = vld [vmem:[#allocation3] sm:$0x1]
      %v2607 = vlaneseq
      %v2608 = vshrl.u32 %v2607, 7
      %v2609 = vsub.s32 0, %v2608
      %v2610 = vrot.slane %v2605, %v2609
      %v2612 = vadd.f32 %v2601, %v2610
      %v2613 = vadd.f32 %v2604, %v2610
      %v2614 = vxor.u32 %v2612, 2147483648
      %v2615 = vxor.u32 %v2613, 2147483648
      %v2616 = vmul.f32 %v2614, 1.442695
      %v2617 = vpow.pop %v2616
      %v2618 = vmul.f32 %v2615, 1.442695
      %v2619 = vpow.pop %v2618
      %v2620 = vadd.f32 %v2617, 1.0
      %v2621 = vadd.f32 %v2619, 1.0
      %v2622 = vrcp.pop %v2620
      %v2623 = vmul.f32 1.0, %v2622
      %v2624 = vrcp.pop %v2621
      %v2625 = vmul.f32 1.0, %v2624
      %2627 = vset.pattern.permute.xlu0 0
      %2628 = vperm.xlu0 %2627, %v2623
      %v2629 = vpop.permute.xlu0 %2628
      %2632 = vset.pattern.permute.xlu0 0
      %2633 = vperm.xlu0 %2632, %v2625
      %v2634 = vpop.permute.xlu0 %2633
      %2636 = vst [vmem:[%s7] sm:$0xff] %v2629
      %2637 = vst [vmem:[%s7 + $0x8] sm:$0xff] %v2634
    $region45: #{discriminator_forward.1} parent=1 // pred_fallthru
      _
    // Predicated region
    $region46: #{discriminator_forward.1} parent=1 // pred_check
      _
    $region47: #{discriminator_forward.1} parent=1 // pred_check_branch
      %2639 = sbr.rel (0) target = $region49
    $region48: #{discriminator_forward.1} parent=1 // pred_region
      _
    $region49: #{discriminator_forward.1} parent=1 // pred_fallthru
      _
    // Predicated region
    $region50: #{discriminator_forward.1} parent=1 // pred_check
      _
    $region51: #{discriminator_forward.1} parent=1 // pred_check_branch
      %2641 = sbr.rel (0) target = $region53
    $region52: #{discriminator_forward.1} parent=1 // pred_region
      _
    $region53: #{discriminator_forward.1} parent=1 // pred_fallthru
      _
    %2642 = vsyncpa [#allocation5], 1
    %2643 = vsyncpa [#allocation7], 1

</llo_original>
